<compile_context>
chip_gen: v5e
topology: v5e:2x2
jax: 0.10.0
libtpu: 0.0.40
codegen_flags: <defaults>
</compile_context>

<pallas_src>
import functools

import jax
import jax.numpy as jnp
from jax import lax
from jax.experimental import pallas as pl
from jax.experimental.pallas import tpu as pltpu


def _attention_wide_kernel(x_ref, y_ref, wkt_ref, wqt_ref, wvt_ref, wut_ref, bu_ref,
                           o_ref, *, emb, heads):
    t = x_ref.shape[0]
    x = x_ref[...]                                     # (t, e) f32
    y = y_ref[...]                                     # (t, e) f32

    # bf16 weights -> f32 once in registers; all accumulation stays f32.
    wkt = wkt_ref[...].astype(jnp.float32)             # (e, h*e)
    wqt = wqt_ref[...].astype(jnp.float32)             # (e, h*e)  (1/sqrt(e) pre-folded)
    wvt = wvt_ref[...].astype(jnp.float32)             # (e, h*e)

    # Fused, lane-dense projections for all heads at once.
    k_all = jnp.dot(x, wkt, preferred_element_type=jnp.float32)   # (t, h*e)
    # TODO(synk): nn.Dropout(p=0.2) on the query projection is eval-mode identity here.
    q_all = jnp.dot(y, wqt, preferred_element_type=jnp.float32)   # (t, h*e)
    v_all = jnp.dot(x, wvt, preferred_element_type=jnp.float32)   # (t, h*e)

    # Head-major views: (t, h*e) -> (h, t, e).
    q_h = q_all.reshape(t, heads, emb).transpose(1, 0, 2)
    k_h = k_all.reshape(t, heads, emb).transpose(1, 0, 2)
    v_h = v_all.reshape(t, heads, emb).transpose(1, 0, 2)

    # One batched q @ k^T over all heads (h is the batch dim): (h, t, t).
    s = lax.dot_general(q_h, k_h, (((2,), (2,)), ((0,), (0,))),
                        preferred_element_type=jnp.float32)

    # One batched softmax over the key axis (== torch F.softmax(dot, dim=2)).
    p = jnp.exp(s - jnp.max(s, axis=-1, keepdims=True))
    p = p * pl.reciprocal(jnp.sum(p, axis=-1, keepdims=True), approx=False)
    # TODO(synk): the torch module stashes these attention weights on `self`; expose
    # `p` as a second kernel output if that side-channel is ever needed.

    # One batched p @ v over all heads: (h, t, e).
    o_h = lax.dot_general(p, v_h, (((2,), (1,)), ((0,), (0,))),
                          preferred_element_type=jnp.float32)

    # Merge heads back to a lane-dense (t, h*e) value in registers (no VMEM slab, no
    # masked partial stores), then unifyheads as one wide matmul + bias.
    slab = o_h.transpose(1, 0, 2).reshape(t, heads * emb)
    out = jnp.dot(slab, wut_ref[...].astype(jnp.float32),
                  preferred_element_type=jnp.float32)
    o_ref[...] = (out + bu_ref[...]).astype(o_ref.dtype)


def prepare_attention_wide_params(wk, wq, wv, wu, bu, *, weights_dtype=jnp.bfloat16):
    """One-time (init-time) weight prep, hoisted out of the per-call path.

    Transposes out of the PyTorch nn.Linear (out, in) convention, folds the 1/sqrt(e)
    attention-score scale into the query projection, and casts projection weights to
    bf16 to halve their HBM traffic. Bias stays f32.
    """
    he, e = wk.shape
    inv_sqrt_e = 1.0 / (e ** 0.5)                      # == (e**-0.25 on q) * (e**-0.25 on k)
    wkt = wk.T.astype(weights_dtype)                   # (e, h*e)
    wqt = (wq.T * inv_sqrt_e).astype(weights_dtype)    # (e, h*e), score scale folded in
    wvt = wv.T.astype(weights_dtype)                   # (e, h*e)
    wut = wu.T.astype(weights_dtype)                   # (h*e, e)
    bu2d = bu.reshape(1, -1).astype(jnp.float32)       # (1, e)
    return wkt, wqt, wvt, wut, bu2d


def attention_wide(x, y, params, *, heads):
    """AttentionWide forward.

    x, y: (t, e)    -> returns (1, t, e)   (matches the torch module, b = 1)
          (b, t, e) -> returns (b, t, e)   (batched extension; one grid step per
                                            sample, weights stay VMEM-resident)
    """
    wkt, wqt, wvt, wut, bu2d = params
    if x.ndim == 2:
        x, y = x[None], y[None]
    b, t, e = x.shape
    he = heads * e
    assert wkt.shape == (e, he) and wqt.shape == (e, he) and wvt.shape == (e, he)
    assert wut.shape == (he, e) and bu2d.shape == (1, e)
    # NOTE: the fully-resident per-sample design holds (h,t,t) + 3*(t,h*e) f32 live.
    # Fine for small t on v5e/v6e/v7x; for large t switch to a query-block grid with
    # flash-style online softmax, sized for v7x's 64 MiB VMEM.

    kernel = functools.partial(_attention_wide_kernel, emb=e, heads=heads)

    sample_spec = pl.BlockSpec((None, t, e), lambda i: (i, 0, 0))

    def resident(shape):
        # Constant block index across the batch axis -> weight stays in VMEM.
        return pl.BlockSpec(shape, lambda i: (0, 0))

    out = pl.pallas_call(
        kernel,
        grid=(b,),
        in_specs=[
            sample_spec,               # x
            sample_spec,               # y
            resident((e, he)),         # wkt (bf16)
            resident((e, he)),         # wqt (bf16, pre-scaled)
            resident((e, he)),         # wvt (bf16)
            resident((he, e)),         # wut (bf16)
            resident((1, e)),          # bu  (f32)
        ],
        out_specs=sample_spec,
        out_shape=jax.ShapeDtypeStruct((b, t, e), x.dtype),
        compiler_params=pltpu.CompilerParams(
            dimension_semantics=("parallel",)),   # batch shards across v7x's 2 TCs
    )(x, y, wkt, wqt, wvt, wut, bu2d)

    return out


def _linear_init(key, out_features, in_features):
    # Deterministic stand-in for PyTorch nn.Linear default init: U(-1/sqrt(in), 1/sqrt(in)).
    bound = 1.0 / (in_features ** 0.5)
    return jax.random.uniform(key, (out_features, in_features),
                              minval=-bound, maxval=bound, dtype=jnp.float32)


def _ref_forward(x, y, wk, wq, wv, wu, bu, *, heads):
    # Pure-JAX f32 reference matching the PyTorch module (eval-mode dropout).
    t, e = x.shape
    b = 1
    scale = e ** 0.25
    keys = (x @ wk.T).reshape(b, t, heads, e).transpose(0, 2, 1, 3)
    queries = (y @ wq.T).reshape(b, t, heads, e).transpose(0, 2, 1, 3)
    values = (x @ wv.T).reshape(b, t, heads, e).transpose(0, 2, 1, 3)
    queries = queries / scale
    keys = keys / scale
    dot = jnp.einsum("bhqe,bhke->bhqk", queries, keys)
    dot = jax.nn.softmax(dot, axis=-1)
    o = jnp.einsum("bhqk,bhke->bhqe", dot, values)
    o = o.transpose(0, 2, 1, 3).reshape(b, t, heads * e)
    return o @ wu.T + bu


if __name__ == "__main__":
    emb, heads, t = 32, 8, 8

    root = jax.random.PRNGKey(0)
    kx, ky, kk, kq, kv, ku, kb, kxb, kyb = jax.random.split(root, 9)

    x = jax.random.normal(kx, (t, emb), dtype=jnp.float32)
    y = jax.random.normal(ky, (t, emb), dtype=jnp.float32)

    wk = _linear_init(kk, emb * heads, emb)   # tokeys.weight
    wq = _linear_init(kq, emb * heads, emb)   # toqueries.weight
    wv = _linear_init(kv, emb * heads, emb)   # tovalues.weight
    wu = _linear_init(ku, emb, emb * heads)   # unifyheads.weight
    bound = 1.0 / ((emb * heads) ** 0.5)
    bu = jax.random.uniform(kb, (emb,), minval=-bound, maxval=bound,
                            dtype=jnp.float32)  # unifyheads.bias

    # Init-time weight prep (transpose, fold score scale, bf16 cast) — done once.
    params = prepare_attention_wide_params(wk, wq, wv, wu, bu)

    # --- Single-sample call: exactly the torch module's forward (b = 1). ---
    out = attention_wide(x, y, params, heads=heads)
    jax.block_until_ready(out)

    ref_out = _ref_forward(x, y, wk, wq, wv, wu, bu, heads=heads)
    assert out.shape == (1, t, emb)
    # Tolerance reflects the bf16 projection weights (activations/softmax stay f32).
    assert jnp.allclose(out, ref_out, atol=2e-2, rtol=2e-2)

    # --- Batched call: one grid step per sample, weights VMEM-resident across steps. ---
    bsz = 4
    xb = jax.random.normal(kxb, (bsz, t, emb), dtype=jnp.float32)
    yb = jax.random.normal(kyb, (bsz, t, emb), dtype=jnp.float32)
    out_b = attention_wide(xb, yb, params, heads=heads)
    jax.block_until_ready(out_b)

    ref_b = jnp.stack([_ref_forward(xb[i], yb[i], wk, wq, wv, wu, bu, heads=heads)[0]
                       for i in range(bsz)])
    assert out_b.shape == (bsz, t, emb)
    assert jnp.allclose(out_b, ref_b, atol=2e-2, rtol=2e-2)

    print("KERNEL_OK")
</pallas_src>

<mosaic_0001>
module attributes {stable_mosaic.version = 11 : i64} {
  func.func @_attention_wide_kernel(%arg0: i32, %arg1: memref<1x8x32xf32, #tpu.memory_space<vmem>>, %arg2: memref<1x8x32xf32, #tpu.memory_space<vmem>>, %arg3: memref<32x256xbf16, #tpu.memory_space<vmem>>, %arg4: memref<32x256xbf16, #tpu.memory_space<vmem>>, %arg5: memref<32x256xbf16, #tpu.memory_space<vmem>>, %arg6: memref<256x32xbf16, #tpu.memory_space<vmem>>, %arg7: memref<1x32xf32, #tpu.memory_space<vmem>>, %arg8: memref<1x8x32xf32, #tpu.memory_space<vmem>>) attributes {dimension_semantics = [#tpu.dimension_semantics<parallel>], iteration_bounds = array<i64: 1>, scalar_prefetch = 0 : i64, scratch_operands = 0 : i64, tpu.core_type = #tpu.core_type<tc>, window_params = [{transform_indices = @transform_0, window_bounds = array<i64: 1, 8, 32>}, {transform_indices = @transform_1, window_bounds = array<i64: 1, 8, 32>}, {pipeline_mode = #tpu.pipeline_mode<synchronous>, transform_indices = @transform_2, window_bounds = array<i64: 32, 256>}, {pipeline_mode = #tpu.pipeline_mode<synchronous>, transform_indices = @transform_3, window_bounds = array<i64: 32, 256>}, {pipeline_mode = #tpu.pipeline_mode<synchronous>, transform_indices = @transform_4, window_bounds = array<i64: 32, 256>}, {pipeline_mode = #tpu.pipeline_mode<synchronous>, transform_indices = @transform_5, window_bounds = array<i64: 256, 32>}, {pipeline_mode = #tpu.pipeline_mode<synchronous>, transform_indices = @transform_6, window_bounds = array<i64: 1, 32>}, {transform_indices = @transform_7, window_bounds = array<i64: 1, 8, 32>}]} {
    %c0 = arith.constant 0 : index
    %c0_0 = arith.constant 0 : index
    %c0_1 = arith.constant 0 : index
    %0 = vector.load %arg1[%c0, %c0_0, %c0_1] : memref<1x8x32xf32, #tpu.memory_space<vmem>>, vector<1x8x32xf32>
    %1 = vector.shape_cast %0 : vector<1x8x32xf32> to vector<8x32xf32>
    %c0_2 = arith.constant 0 : index
    %c0_3 = arith.constant 0 : index
    %c0_4 = arith.constant 0 : index
    %2 = vector.load %arg2[%c0_2, %c0_3, %c0_4] : memref<1x8x32xf32, #tpu.memory_space<vmem>>, vector<1x8x32xf32>
    %3 = vector.shape_cast %2 : vector<1x8x32xf32> to vector<8x32xf32>
    %c0_5 = arith.constant 0 : index
    %c0_6 = arith.constant 0 : index
    %4 = vector.load %arg3[%c0_5, %c0_6] : memref<32x256xbf16, #tpu.memory_space<vmem>>, vector<32x256xbf16>
    %5 = arith.extf %4 : vector<32x256xbf16> to vector<32x256xf32>
    %c0_7 = arith.constant 0 : index
    %c0_8 = arith.constant 0 : index
    %6 = vector.load %arg4[%c0_7, %c0_8] : memref<32x256xbf16, #tpu.memory_space<vmem>>, vector<32x256xbf16>
    %7 = arith.extf %6 : vector<32x256xbf16> to vector<32x256xf32>
    %c0_9 = arith.constant 0 : index
    %c0_10 = arith.constant 0 : index
    %8 = vector.load %arg5[%c0_9, %c0_10] : memref<32x256xbf16, #tpu.memory_space<vmem>>, vector<32x256xbf16>
    %9 = arith.extf %8 : vector<32x256xbf16> to vector<32x256xf32>
    %cst = arith.constant dense<0.000000e+00> : vector<8x256xf32>
    %10 = tpu.matmul %1, %5, %cst {dimension_numbers = #tpu.dot_dimension_numbers<[1], [0], [0], [1], [0, 0, 1, 1], [], []>} : vector<8x32xf32>, vector<32x256xf32>, vector<8x256xf32> -> vector<8x256xf32>
    %cst_11 = arith.constant dense<0.000000e+00> : vector<8x256xf32>
    %11 = tpu.matmul %3, %7, %cst_11 {dimension_numbers = #tpu.dot_dimension_numbers<[1], [0], [0], [1], [0, 0, 1, 1], [], []>} : vector<8x32xf32>, vector<32x256xf32>, vector<8x256xf32> -> vector<8x256xf32>
    %cst_12 = arith.constant dense<0.000000e+00> : vector<8x256xf32>
    %12 = tpu.matmul %1, %9, %cst_12 {dimension_numbers = #tpu.dot_dimension_numbers<[1], [0], [0], [1], [0, 0, 1, 1], [], []>} : vector<8x32xf32>, vector<32x256xf32>, vector<8x256xf32> -> vector<8x256xf32>
    %13 = vector.shape_cast %11 : vector<8x256xf32> to vector<8x8x32xf32>
    %14 = tpu.transpose %13, [1, 0, 2] : vector<8x8x32xf32> -> vector<8x8x32xf32>
    %15 = vector.shape_cast %10 : vector<8x256xf32> to vector<8x8x32xf32>
    %16 = tpu.transpose %15, [1, 0, 2] : vector<8x8x32xf32> -> vector<8x8x32xf32>
    %17 = vector.shape_cast %12 : vector<8x256xf32> to vector<8x8x32xf32>
    %18 = tpu.transpose %17, [1, 0, 2] : vector<8x8x32xf32> -> vector<8x8x32xf32>
    %cst_13 = arith.constant dense<0.000000e+00> : vector<8x8x8xf32>
    %19 = tpu.matmul %14, %16, %cst_13 {dimension_numbers = #tpu.dot_dimension_numbers<[2], [2], [1], [1], [0, 0, 0, 1, 1, 1], [0], [0]>} : vector<8x8x32xf32>, vector<8x8x32xf32>, vector<8x8x8xf32> -> vector<8x8x8xf32>
    %cst_14 = arith.constant dense<0xFF800000> : vector<8x8xf32>
    %20 = vector.multi_reduction <maximumf>, %19, %cst_14 [2] : vector<8x8x8xf32> to vector<8x8xf32>
    %21 = vector.shape_cast %20 : vector<8x8xf32> to vector<8x8x1xf32>
    %22 = vector.broadcast %21 : vector<8x8x1xf32> to vector<8x8x8xf32>
    %23 = arith.subf %19, %22 : vector<8x8x8xf32>
    %24 = math.exp %23 : vector<8x8x8xf32>
    %cst_15 = arith.constant dense<0.000000e+00> : vector<8x8xf32>
    %25 = vector.multi_reduction <add>, %24, %cst_15 [2] : vector<8x8x8xf32> to vector<8x8xf32>
    %26 = vector.shape_cast %25 : vector<8x8xf32> to vector<8x8x1xf32>
    %27 = tpu.reciprocal %26 : vector<8x8x1xf32> -> vector<8x8x1xf32>
    %28 = vector.broadcast %27 : vector<8x8x1xf32> to vector<8x8x8xf32>
    %29 = arith.mulf %24, %28 : vector<8x8x8xf32>
    %cst_16 = arith.constant dense<0.000000e+00> : vector<8x8x32xf32>
    %30 = tpu.matmul %29, %18, %cst_16 {dimension_numbers = #tpu.dot_dimension_numbers<[2], [1], [1], [2], [0, 0, 0, 1, 1, 2], [0], [0]>} : vector<8x8x8xf32>, vector<8x8x32xf32>, vector<8x8x32xf32> -> vector<8x8x32xf32>
    %31 = tpu.transpose %30, [1, 0, 2] : vector<8x8x32xf32> -> vector<8x8x32xf32>
    %32 = vector.shape_cast %31 : vector<8x8x32xf32> to vector<8x256xf32>
    %c0_17 = arith.constant 0 : index
    %c0_18 = arith.constant 0 : index
    %33 = vector.load %arg6[%c0_17, %c0_18] : memref<256x32xbf16, #tpu.memory_space<vmem>>, vector<256x32xbf16>
    %34 = arith.extf %33 : vector<256x32xbf16> to vector<256x32xf32>
    %cst_19 = arith.constant dense<0.000000e+00> : vector<8x32xf32>
    %35 = tpu.matmul %32, %34, %cst_19 {dimension_numbers = #tpu.dot_dimension_numbers<[1], [0], [0], [1], [0, 0, 1, 1], [], []>} : vector<8x256xf32>, vector<256x32xf32>, vector<8x32xf32> -> vector<8x32xf32>
    %c0_20 = arith.constant 0 : index
    %c0_21 = arith.constant 0 : index
    %36 = vector.load %arg7[%c0_20, %c0_21] : memref<1x32xf32, #tpu.memory_space<vmem>>, vector<1x32xf32>
    %37 = vector.broadcast %36 : vector<1x32xf32> to vector<8x32xf32>
    %38 = arith.addf %35, %37 : vector<8x32xf32>
    %c0_22 = arith.constant 0 : index
    %c0_23 = arith.constant 0 : index
    %c0_24 = arith.constant 0 : index
    %39 = vector.load %arg8[%c0_22, %c0_23, %c0_24] : memref<1x8x32xf32, #tpu.memory_space<vmem>>, vector<1x8x32xf32>
    %40 = vector.shape_cast %39 : vector<1x8x32xf32> to vector<8x32xf32>
    %41 = vector.shape_cast %38 : vector<8x32xf32> to vector<1x8x32xf32>
    tpu.vector_store %arg8[%c0_22, %c0_23, %c0_24], %41 {strides = array<i32>} : memref<1x8x32xf32, #tpu.memory_space<vmem>>, vector<1x8x32xf32>,
    return
  }
  func.func @transform_0(%arg0: i32) -> (i32, i32, i32) {
    %c0_i32 = arith.constant 0 : i32
    %c0_i32_0 = arith.constant 0 : i32
    %c0_i32_1 = arith.constant 0 : i32
    return %arg0, %c0_i32, %c0_i32_0 : i32, i32, i32
  }
  func.func @transform_1(%arg0: i32) -> (i32, i32, i32) {
    %c0_i32 = arith.constant 0 : i32
    %c0_i32_0 = arith.constant 0 : i32
    %c0_i32_1 = arith.constant 0 : i32
    return %arg0, %c0_i32, %c0_i32_0 : i32, i32, i32
  }
  func.func @transform_2(%arg0: i32) -> (i32, i32) {
    %c0_i32 = arith.constant 0 : i32
    %c0_i32_0 = arith.constant 0 : i32
    %c0_i32_1 = arith.constant 0 : i32
    return %c0_i32, %c0_i32_0 : i32, i32
  }
  func.func @transform_3(%arg0: i32) -> (i32, i32) {
    %c0_i32 = arith.constant 0 : i32
    %c0_i32_0 = arith.constant 0 : i32
    %c0_i32_1 = arith.constant 0 : i32
    return %c0_i32, %c0_i32_0 : i32, i32
  }
  func.func @transform_4(%arg0: i32) -> (i32, i32) {
    %c0_i32 = arith.constant 0 : i32
    %c0_i32_0 = arith.constant 0 : i32
    %c0_i32_1 = arith.constant 0 : i32
    return %c0_i32, %c0_i32_0 : i32, i32
  }
  func.func @transform_5(%arg0: i32) -> (i32, i32) {
    %c0_i32 = arith.constant 0 : i32
    %c0_i32_0 = arith.constant 0 : i32
    %c0_i32_1 = arith.constant 0 : i32
    return %c0_i32, %c0_i32_0 : i32, i32
  }
  func.func @transform_6(%arg0: i32) -> (i32, i32) {
    %c0_i32 = arith.constant 0 : i32
    %c0_i32_0 = arith.constant 0 : i32
    %c0_i32_1 = arith.constant 0 : i32
    return %c0_i32, %c0_i32_0 : i32, i32
  }
  func.func @transform_7(%arg0: i32) -> (i32, i32, i32) {
    %c0_i32 = arith.constant 0 : i32
    %c0_i32_0 = arith.constant 0 : i32
    %c0_i32_1 = arith.constant 0 : i32
    return %arg0, %c0_i32, %c0_i32_0 : i32, i32, i32
  }
}

</mosaic_0001>

<llo_original>
// kernel: tpu_custom_call.1
$region0: #{tpu_custom_call.1}
  #allocation0 [shape = 'u32[]', space=smem, size = 0x4, offset = 0x4, fixed_abs, tag = 'smem constant byte address 0x4 - core index']
  #allocation1 [shape = 'u32[72,128]{1,0:T(1,128)}', space=vmem, size = 0x9000, scoped, tag = 'internal scratch']
  %s0 = inlined_call_operand.vmem [shape: f32[1,8,32], index: 0, kind: input, shape index: {}]
  %s1 = inlined_call_operand.vmem [shape: f32[1,8,32], index: 1, kind: input, shape index: {}]
  %s2 = inlined_call_operand.vmem [shape: bf16[32,256], index: 2, kind: input, shape index: {}]
  %s3 = inlined_call_operand.vmem [shape: bf16[32,256], index: 3, kind: input, shape index: {}]
  %s4 = inlined_call_operand.vmem [shape: bf16[32,256], index: 4, kind: input, shape index: {}]
  %s5 = inlined_call_operand.vmem [shape: bf16[256,32], index: 5, kind: input, shape index: {}]
  %s6 = inlined_call_operand.vmem [shape: f32[1,32], index: 6, kind: input, shape index: {}]
  %s7 = inlined_call_operand.hbm [shape: f32[1,8,32], index: 7, kind: output, shape index: {}]
  %s8 = sld [smem:[#allocation0]]
  $region38: #{tpu_custom_call.1} parent=0
    _
  %s10 = ssub.s32 1, %s8
  %s11 = scalar_select 0, %s10, %s8
  $region1: #{tpu_custom_call.1} parent=0
    #allocation2 [shape = 'u8[4096]{0}', space=vmem, size = 0x1000, scoped, tag = 'output window, operand 0, single buffered']
    #allocation3 [shape = 's32[1]{0}', space=sflag, size = 0x4, scoped, tag = 'scoped memory for tpu_custom_call.1']
    %12 = vsyncpa [#allocation3], 0
    // Predicated region
    $region2: #{tpu_custom_call.1} parent=1 // pred_check
      _
    $region3: #{tpu_custom_call.1} parent=1 // pred_check_branch
      %14 = sbr.rel (0) target = $region5
    $region4: #{tpu_custom_call.1} parent=1 // pred_region
      _
    $region5: #{tpu_custom_call.1} parent=1 // pred_fallthru
      _
    // Predicated region
    $region6: #{tpu_custom_call.1} parent=1 // pred_check
      _
    $region7: #{tpu_custom_call.1} parent=1 // pred_check_branch
      %16 = sbr.rel (0) target = $region9
    $region8: #{tpu_custom_call.1} parent=1 // pred_region
      _
    $region9: #{tpu_custom_call.1} parent=1 // pred_fallthru
      _
    // Predicated region
    $region10: #{tpu_custom_call.1} parent=1 // pred_check
      _
    $region11: #{tpu_custom_call.1} parent=1 // pred_check_branch
      %18 = sbr.rel (0) target = $region13
    $region12: #{tpu_custom_call.1} parent=1 // pred_region
      _
    $region13: #{tpu_custom_call.1} parent=1 // pred_fallthru
      _
    // Predicated region
    $region14: #{tpu_custom_call.1} parent=1 // pred_check
      _
    $region15: #{tpu_custom_call.1} parent=1 // pred_check_branch
      %20 = sbr.rel (0) target = $region17
    $region16: #{tpu_custom_call.1} parent=1 // pred_region
      _
    $region17: #{tpu_custom_call.1} parent=1 // pred_fallthru
      _
    // Predicated region
    $region18: #{tpu_custom_call.1} parent=1 // pred_check
      _
    $region19: #{tpu_custom_call.1} parent=1 // pred_check_branch
      %22 = sbr.rel (0) target = $region21
    $region20: #{tpu_custom_call.1} parent=1 // pred_region
      _
    $region21: #{tpu_custom_call.1} parent=1 // pred_fallthru
      _
    // Predicated region
    $region22: #{tpu_custom_call.1} parent=1 // pred_check
      _
    $region23: #{tpu_custom_call.1} parent=1 // pred_check_branch
      %24 = sbr.rel (0) target = $region25
    $region24: #{tpu_custom_call.1} parent=1 // pred_region
      _
    $region25: #{tpu_custom_call.1} parent=1 // pred_fallthru
      _
    // Predicated region
    $region26: #{tpu_custom_call.1} parent=1 // pred_check
      _
    $region27: #{tpu_custom_call.1} parent=1 // pred_check_branch
      %26 = sbr.rel (0) target = $region29
    $region28: #{tpu_custom_call.1} parent=1 // pred_region
      _
    $region29: #{tpu_custom_call.1} parent=1 // pred_fallthru
      _
    %v27 = vld [vmem:[%s0] sm:$0xff]
    %v28 = vld [vmem:[%s1] sm:$0xff]
    %v29 = vld [vmem:[%s2] sm:$0xff]
    %v30 = vld [vmem:[%s2 + $0x8] sm:$0xff]
    %v31 = vld [vmem:[%s2 + $0x10] sm:$0xff]
    %v32 = vld [vmem:[%s2 + $0x18] sm:$0xff]
    %v33 = vunpack.c.l.bf16 %v29
    %v34 = vunpack.c.h.bf16 %v29
    %v35 = vunpack.c.l.bf16 %v30
    %v36 = vunpack.c.h.bf16 %v30
    %v37 = vunpack.c.l.bf16 %v31
    %v38 = vunpack.c.h.bf16 %v31
    %v39 = vunpack.c.l.bf16 %v32
    %v40 = vunpack.c.h.bf16 %v32
    %v41 = vld [vmem:[%s3] sm:$0xff]
    %v42 = vld [vmem:[%s3 + $0x8] sm:$0xff]
    %v43 = vld [vmem:[%s3 + $0x10] sm:$0xff]
    %v44 = vld [vmem:[%s3 + $0x18] sm:$0xff]
    %v45 = vunpack.c.l.bf16 %v41
    %v46 = vunpack.c.h.bf16 %v41
    %v47 = vunpack.c.l.bf16 %v42
    %v48 = vunpack.c.h.bf16 %v42
    %v49 = vunpack.c.l.bf16 %v43
    %v50 = vunpack.c.h.bf16 %v43
    %v51 = vunpack.c.l.bf16 %v44
    %v52 = vunpack.c.h.bf16 %v44
    %v53 = vld [vmem:[%s4] sm:$0xff]
    %v54 = vld [vmem:[%s4 + $0x8] sm:$0xff]
    %v55 = vld [vmem:[%s4 + $0x10] sm:$0xff]
    %v56 = vld [vmem:[%s4 + $0x18] sm:$0xff]
    %v57 = vunpack.c.l.bf16 %v53
    %v58 = vunpack.c.h.bf16 %v53
    %v59 = vunpack.c.l.bf16 %v54
    %v60 = vunpack.c.h.bf16 %v54
    %v61 = vunpack.c.l.bf16 %v55
    %v62 = vunpack.c.h.bf16 %v55
    %v63 = vunpack.c.l.bf16 %v56
    %v64 = vunpack.c.h.bf16 %v56
    %vm65 = vcmask 261120
    %v67 = vsel %vm65, %v27, 0
    %69 = vmatpush.msra.mxu0 0.0
    %70 = vmatpush.msra.mxu0 0.0
    %71 = vmatpush.msra.mxu0 0.0
    %72 = vmatpush.msra.mxu0 0.0
    %73 = vmatpush.msra.mxu0 0.0
    %74 = vmatpush.msra.mxu0 0.0
    %75 = vmatpush.msra.mxu0 0.0
    %76 = vmatpush.msra.mxu0 0.0
    %77 = vmatpush.msra.mxu0 0.0
    %78 = vmatpush.msra.mxu0 0.0
    %79 = vmatpush.msra.mxu0 0.0
    %80 = vmatpush.msra.mxu0 0.0
    %81 = vmatpush.msra.mxu0 %v39
    %82 = vmatpush.msra.mxu0 %v37
    %83 = vmatpush.msra.mxu0 %v35
    %84 = vmatpush.msra.mxu0 %v33
    %85 = vmatmul.f32.gmra.mxu0 %v67
    %v86 = vpop.f32.mrf.mxu0
    %v87 = vadd.f32 0.0, %v86
    %88 = vdwg.mxu0
    %89 = vmatpush.msra.mxu0 0.0
    %90 = vmatpush.msra.mxu0 0.0
    %91 = vmatpush.msra.mxu0 0.0
    %92 = vmatpush.msra.mxu0 0.0
    %93 = vmatpush.msra.mxu0 0.0
    %94 = vmatpush.msra.mxu0 0.0
    %95 = vmatpush.msra.mxu0 0.0
    %96 = vmatpush.msra.mxu0 0.0
    %97 = vmatpush.msra.mxu0 0.0
    %98 = vmatpush.msra.mxu0 0.0
    %99 = vmatpush.msra.mxu0 0.0
    %100 = vmatpush.msra.mxu0 0.0
    %101 = vmatpush.msra.mxu0 %v40
    %102 = vmatpush.msra.mxu0 %v38
    %103 = vmatpush.msra.mxu0 %v36
    %104 = vmatpush.msra.mxu0 %v34
    %105 = vmatmul.f32.gmra.mxu0 %v67
    %v106 = vpop.f32.mrf.mxu0
    %v107 = vadd.f32 0.0, %v106
    %108 = vdwg.mxu0
    %v110 = vsel %vm65, %v28, 0
    %112 = vmatpush.msra.mxu0 0.0
    %113 = vmatpush.msra.mxu0 0.0
    %114 = vmatpush.msra.mxu0 0.0
    %115 = vmatpush.msra.mxu0 0.0
    %116 = vmatpush.msra.mxu0 0.0
    %117 = vmatpush.msra.mxu0 0.0
    %118 = vmatpush.msra.mxu0 0.0
    %119 = vmatpush.msra.mxu0 0.0
    %120 = vmatpush.msra.mxu0 0.0
    %121 = vmatpush.msra.mxu0 0.0
    %122 = vmatpush.msra.mxu0 0.0
    %123 = vmatpush.msra.mxu0 0.0
    %124 = vmatpush.msra.mxu0 %v51
    %125 = vmatpush.msra.mxu0 %v49
    %126 = vmatpush.msra.mxu0 %v47
    %127 = vmatpush.msra.mxu0 %v45
    %128 = vmatmul.f32.gmra.mxu0 %v110
    %v129 = vpop.f32.mrf.mxu0
    %v130 = vadd.f32 0.0, %v129
    %131 = vdwg.mxu0
    %132 = vmatpush.msra.mxu0 0.0
    %133 = vmatpush.msra.mxu0 0.0
    %134 = vmatpush.msra.mxu0 0.0
    %135 = vmatpush.msra.mxu0 0.0
    %136 = vmatpush.msra.mxu0 0.0
    %137 = vmatpush.msra.mxu0 0.0
    %138 = vmatpush.msra.mxu0 0.0
    %139 = vmatpush.msra.mxu0 0.0
    %140 = vmatpush.msra.mxu0 0.0
    %141 = vmatpush.msra.mxu0 0.0
    %142 = vmatpush.msra.mxu0 0.0
    %143 = vmatpush.msra.mxu0 0.0
    %144 = vmatpush.msra.mxu0 %v52
    %145 = vmatpush.msra.mxu0 %v50
    %146 = vmatpush.msra.mxu0 %v48
    %147 = vmatpush.msra.mxu0 %v46
    %148 = vmatmul.f32.gmra.mxu0 %v110
    %v149 = vpop.f32.mrf.mxu0
    %v150 = vadd.f32 0.0, %v149
    %151 = vdwg.mxu0
    %152 = vmatpush.msra.mxu0 0.0
    %153 = vmatpush.msra.mxu0 0.0
    %154 = vmatpush.msra.mxu0 0.0
    %155 = vmatpush.msra.mxu0 0.0
    %156 = vmatpush.msra.mxu0 0.0
    %157 = vmatpush.msra.mxu0 0.0
    %158 = vmatpush.msra.mxu0 0.0
    %159 = vmatpush.msra.mxu0 0.0
    %160 = vmatpush.msra.mxu0 0.0
    %161 = vmatpush.msra.mxu0 0.0
    %162 = vmatpush.msra.mxu0 0.0
    %163 = vmatpush.msra.mxu0 0.0
    %164 = vmatpush.msra.mxu0 %v63
    %165 = vmatpush.msra.mxu0 %v61
    %166 = vmatpush.msra.mxu0 %v59
    %167 = vmatpush.msra.mxu0 %v57
    %168 = vmatmul.f32.gmra.mxu0 %v67
    %v169 = vpop.f32.mrf.mxu0
    %v170 = vadd.f32 0.0, %v169
    %171 = vdwg.mxu0
    %172 = vmatpush.msra.mxu0 0.0
    %173 = vmatpush.msra.mxu0 0.0
    %174 = vmatpush.msra.mxu0 0.0
    %175 = vmatpush.msra.mxu0 0.0
    %176 = vmatpush.msra.mxu0 0.0
    %177 = vmatpush.msra.mxu0 0.0
    %178 = vmatpush.msra.mxu0 0.0
    %179 = vmatpush.msra.mxu0 0.0
    %180 = vmatpush.msra.mxu0 0.0
    %181 = vmatpush.msra.mxu0 0.0
    %182 = vmatpush.msra.mxu0 0.0
    %183 = vmatpush.msra.mxu0 0.0
    %184 = vmatpush.msra.mxu0 %v64
    %185 = vmatpush.msra.mxu0 %v62
    %186 = vmatpush.msra.mxu0 %v60
    %187 = vmatpush.msra.mxu0 %v58
    %188 = vmatmul.f32.gmra.mxu0 %v67
    %v189 = vpop.f32.mrf.mxu0
    %v190 = vadd.f32 0.0, %v189
    %191 = vdwg.mxu0
    %193 = vrot.lane.b32.xlu0 %v130, 96
    %v194 = vpop.permute.xlu0 %193
    %196 = vrot.lane.b32.xlu0 %v130, 64
    %v197 = vpop.permute.xlu0 %196
    %199 = vrot.lane.b32.xlu0 %v130, 32
    %v200 = vpop.permute.xlu0 %199
    %203 = vrot.lane.b32.xlu0 %v150, 96
    %v204 = vpop.permute.xlu0 %203
    %206 = vrot.lane.b32.xlu0 %v150, 64
    %v207 = vpop.permute.xlu0 %206
    %209 = vrot.lane.b32.xlu0 %v150, 32
    %v210 = vpop.permute.xlu0 %209
    %v212 = vrot.slane %v197, 4
    %vm213 = vcmask 1047556
    %v214 = vsel %vm213, %v212, %v130
    %v215 = vrot.slane %v130, 4
    %v216 = vsel %vm213, %v197, %v215
    %v218 = vunpack.c.l.s4 1983009808
    %v219 = vunpack.c.0.s8 %v218
    %v220 = vperm.slane %v214, %v219
    %v222 = vunpack.c.l.s4 1983009808
    %v223 = vunpack.c.0.s8 %v222
    %v224 = vperm.slane %v216, %v223
    %v225 = vrot.slane %v200, 4
    %v226 = vsel %vm213, %v225, %v194
    %v227 = vrot.slane %v194, 4
    %v228 = vsel %vm213, %v200, %v227
    %v230 = vunpack.c.l.s4 1983009808
    %v231 = vunpack.c.0.s8 %v230
    %v232 = vperm.slane %v226, %v231
    %v234 = vunpack.c.l.s4 1983009808
    %v235 = vunpack.c.0.s8 %v234
    %v236 = vperm.slane %v228, %v235
    %v237 = vrot.slane %v207, 4
    %v238 = vsel %vm213, %v237, %v150
    %v239 = vrot.slane %v150, 4
    %v240 = vsel %vm213, %v207, %v239
    %v242 = vunpack.c.l.s4 1983009808
    %v243 = vunpack.c.0.s8 %v242
    %v244 = vperm.slane %v238, %v243
    %v246 = vunpack.c.l.s4 1983009808
    %v247 = vunpack.c.0.s8 %v246
    %v248 = vperm.slane %v240, %v247
    %v249 = vrot.slane %v210, 4
    %v250 = vsel %vm213, %v249, %v204
    %v251 = vrot.slane %v204, 4
    %v252 = vsel %vm213, %v210, %v251
    %v254 = vunpack.c.l.s4 1983009808
    %v255 = vunpack.c.0.s8 %v254
    %v256 = vperm.slane %v250, %v255
    %v258 = vunpack.c.l.s4 1983009808
    %v259 = vunpack.c.0.s8 %v258
    %v260 = vperm.slane %v252, %v259
    %v261 = vrot.slane %v232, 4
    %v262 = vsel %vm213, %v261, %v220
    %v263 = vrot.slane %v220, 4
    %v264 = vsel %vm213, %v232, %v263
    %v266 = vunpack.c.l.s4 1934713408
    %v267 = vunpack.c.0.s8 %v266
    %v268 = vperm.slane %v262, %v267
    %v270 = vunpack.c.l.s4 1934713408
    %v271 = vunpack.c.0.s8 %v270
    %v272 = vperm.slane %v264, %v271
    %v273 = vrot.slane %v236, 4
    %v274 = vsel %vm213, %v273, %v224
    %v275 = vrot.slane %v224, 4
    %v276 = vsel %vm213, %v236, %v275
    %v278 = vunpack.c.l.s4 1934713408
    %v279 = vunpack.c.0.s8 %v278
    %v280 = vperm.slane %v274, %v279
    %v282 = vunpack.c.l.s4 1934713408
    %v283 = vunpack.c.0.s8 %v282
    %v284 = vperm.slane %v276, %v283
    %v285 = vrot.slane %v256, 4
    %v286 = vsel %vm213, %v285, %v244
    %v287 = vrot.slane %v244, 4
    %v288 = vsel %vm213, %v256, %v287
    %v290 = vunpack.c.l.s4 1934713408
    %v291 = vunpack.c.0.s8 %v290
    %v292 = vperm.slane %v286, %v291
    %v294 = vunpack.c.l.s4 1934713408
    %v295 = vunpack.c.0.s8 %v294
    %v296 = vperm.slane %v288, %v295
    %v297 = vrot.slane %v260, 4
    %v298 = vsel %vm213, %v297, %v248
    %v299 = vrot.slane %v248, 4
    %v300 = vsel %vm213, %v260, %v299
    %v302 = vunpack.c.l.s4 1934713408
    %v303 = vunpack.c.0.s8 %v302
    %v304 = vperm.slane %v298, %v303
    %v306 = vunpack.c.l.s4 1934713408
    %v307 = vunpack.c.0.s8 %v306
    %v308 = vperm.slane %v300, %v307
    %v309 = vrot.slane %v292, 4
    %v310 = vsel %vm213, %v309, %v268
    %v311 = vrot.slane %v268, 4
    %v312 = vsel %vm213, %v292, %v311
    %v313 = vrot.slane %v296, 4
    %v314 = vsel %vm213, %v313, %v272
    %v315 = vrot.slane %v272, 4
    %v316 = vsel %vm213, %v296, %v315
    %v317 = vrot.slane %v304, 4
    %v318 = vsel %vm213, %v317, %v280
    %v319 = vrot.slane %v280, 4
    %v320 = vsel %vm213, %v304, %v319
    %v321 = vrot.slane %v308, 4
    %v322 = vsel %vm213, %v321, %v284
    %v323 = vrot.slane %v284, 4
    %v324 = vsel %vm213, %v308, %v323
    %v325 = vrot.slane %v314, 4
    %v326 = vsel %vm213, %v325, %v310
    %v327 = vrot.slane %v310, 4
    %v328 = vsel %vm213, %v314, %v327
    %v330 = vunpack.c.l.s4 1983009808
    %v331 = vunpack.c.0.s8 %v330
    %v332 = vperm.slane %v326, %v331
    %v334 = vunpack.c.l.s4 1983009808
    %v335 = vunpack.c.0.s8 %v334
    %v336 = vperm.slane %v328, %v335
    %v337 = vrot.slane %v316, 4
    %v338 = vsel %vm213, %v337, %v312
    %v339 = vrot.slane %v312, 4
    %v340 = vsel %vm213, %v316, %v339
    %v342 = vunpack.c.l.s4 1983009808
    %v343 = vunpack.c.0.s8 %v342
    %v344 = vperm.slane %v338, %v343
    %v346 = vunpack.c.l.s4 1983009808
    %v347 = vunpack.c.0.s8 %v346
    %v348 = vperm.slane %v340, %v347
    %v349 = vrot.slane %v322, 4
    %v350 = vsel %vm213, %v349, %v318
    %v351 = vrot.slane %v318, 4
    %v352 = vsel %vm213, %v322, %v351
    %v354 = vunpack.c.l.s4 1983009808
    %v355 = vunpack.c.0.s8 %v354
    %v356 = vperm.slane %v350, %v355
    %v358 = vunpack.c.l.s4 1983009808
    %v359 = vunpack.c.0.s8 %v358
    %v360 = vperm.slane %v352, %v359
    %v361 = vrot.slane %v324, 4
    %v362 = vsel %vm213, %v361, %v320
    %v363 = vrot.slane %v320, 4
    %v364 = vsel %vm213, %v324, %v363
    %v366 = vunpack.c.l.s4 1983009808
    %v367 = vunpack.c.0.s8 %v366
    %v368 = vperm.slane %v362, %v367
    %v370 = vunpack.c.l.s4 1983009808
    %v371 = vunpack.c.0.s8 %v370
    %v372 = vperm.slane %v364, %v371
    %v373 = vrot.slane %v344, 4
    %v374 = vsel %vm213, %v373, %v332
    %v375 = vrot.slane %v332, 4
    %v376 = vsel %vm213, %v344, %v375
    %v378 = vunpack.c.l.s4 1934713408
    %v379 = vunpack.c.0.s8 %v378
    %v380 = vperm.slane %v374, %v379
    %v382 = vunpack.c.l.s4 1934713408
    %v383 = vunpack.c.0.s8 %v382
    %v384 = vperm.slane %v376, %v383
    %v385 = vrot.slane %v348, 4
    %v386 = vsel %vm213, %v385, %v336
    %v387 = vrot.slane %v336, 4
    %v388 = vsel %vm213, %v348, %v387
    %v390 = vunpack.c.l.s4 1934713408
    %v391 = vunpack.c.0.s8 %v390
    %v392 = vperm.slane %v386, %v391
    %v394 = vunpack.c.l.s4 1934713408
    %v395 = vunpack.c.0.s8 %v394
    %v396 = vperm.slane %v388, %v395
    %v397 = vrot.slane %v368, 4
    %v398 = vsel %vm213, %v397, %v356
    %v399 = vrot.slane %v356, 4
    %v400 = vsel %vm213, %v368, %v399
    %v402 = vunpack.c.l.s4 1934713408
    %v403 = vunpack.c.0.s8 %v402
    %v404 = vperm.slane %v398, %v403
    %v406 = vunpack.c.l.s4 1934713408
    %v407 = vunpack.c.0.s8 %v406
    %v408 = vperm.slane %v400, %v407
    %v409 = vrot.slane %v372, 4
    %v410 = vsel %vm213, %v409, %v360
    %v411 = vrot.slane %v360, 4
    %v412 = vsel %vm213, %v372, %v411
    %v414 = vunpack.c.l.s4 1934713408
    %v415 = vunpack.c.0.s8 %v414
    %v416 = vperm.slane %v410, %v415
    %v418 = vunpack.c.l.s4 1934713408
    %v419 = vunpack.c.0.s8 %v418
    %v420 = vperm.slane %v412, %v419
    %v421 = vrot.slane %v404, 4
    %v422 = vsel %vm213, %v421, %v380
    %v423 = vrot.slane %v380, 4
    %v424 = vsel %vm213, %v404, %v423
    %v425 = vrot.slane %v408, 4
    %v426 = vsel %vm213, %v425, %v384
    %v427 = vrot.slane %v384, 4
    %v428 = vsel %vm213, %v408, %v427
    %v429 = vrot.slane %v416, 4
    %v430 = vsel %vm213, %v429, %v392
    %v431 = vrot.slane %v392, 4
    %v432 = vsel %vm213, %v416, %v431
    %v433 = vrot.slane %v420, 4
    %v434 = vsel %vm213, %v433, %v396
    %v435 = vrot.slane %v396, 4
    %v436 = vsel %vm213, %v420, %v435
    %438 = vrot.lane.b32.xlu0 %v87, 96
    %v439 = vpop.permute.xlu0 %438
    %441 = vrot.lane.b32.xlu0 %v87, 64
    %v442 = vpop.permute.xlu0 %441
    %444 = vrot.lane.b32.xlu0 %v87, 32
    %v445 = vpop.permute.xlu0 %444
    %448 = vrot.lane.b32.xlu0 %v107, 96
    %v449 = vpop.permute.xlu0 %448
    %451 = vrot.lane.b32.xlu0 %v107, 64
    %v452 = vpop.permute.xlu0 %451
    %454 = vrot.lane.b32.xlu0 %v107, 32
    %v455 = vpop.permute.xlu0 %454
    %v457 = vrot.slane %v442, 4
    %v458 = vsel %vm213, %v457, %v87
    %v459 = vrot.slane %v87, 4
    %v460 = vsel %vm213, %v442, %v459
    %v462 = vunpack.c.l.s4 1983009808
    %v463 = vunpack.c.0.s8 %v462
    %v464 = vperm.slane %v458, %v463
    %v466 = vunpack.c.l.s4 1983009808
    %v467 = vunpack.c.0.s8 %v466
    %v468 = vperm.slane %v460, %v467
    %v469 = vrot.slane %v445, 4
    %v470 = vsel %vm213, %v469, %v439
    %v471 = vrot.slane %v439, 4
    %v472 = vsel %vm213, %v445, %v471
    %v474 = vunpack.c.l.s4 1983009808
    %v475 = vunpack.c.0.s8 %v474
    %v476 = vperm.slane %v470, %v475
    %v478 = vunpack.c.l.s4 1983009808
    %v479 = vunpack.c.0.s8 %v478
    %v480 = vperm.slane %v472, %v479
    %v481 = vrot.slane %v452, 4
    %v482 = vsel %vm213, %v481, %v107
    %v483 = vrot.slane %v107, 4
    %v484 = vsel %vm213, %v452, %v483
    %v486 = vunpack.c.l.s4 1983009808
    %v487 = vunpack.c.0.s8 %v486
    %v488 = vperm.slane %v482, %v487
    %v490 = vunpack.c.l.s4 1983009808
    %v491 = vunpack.c.0.s8 %v490
    %v492 = vperm.slane %v484, %v491
    %v493 = vrot.slane %v455, 4
    %v494 = vsel %vm213, %v493, %v449
    %v495 = vrot.slane %v449, 4
    %v496 = vsel %vm213, %v455, %v495
    %v498 = vunpack.c.l.s4 1983009808
    %v499 = vunpack.c.0.s8 %v498
    %v500 = vperm.slane %v494, %v499
    %v502 = vunpack.c.l.s4 1983009808
    %v503 = vunpack.c.0.s8 %v502
    %v504 = vperm.slane %v496, %v503
    %v505 = vrot.slane %v476, 4
    %v506 = vsel %vm213, %v505, %v464
    %v507 = vrot.slane %v464, 4
    %v508 = vsel %vm213, %v476, %v507
    %v510 = vunpack.c.l.s4 1934713408
    %v511 = vunpack.c.0.s8 %v510
    %v512 = vperm.slane %v506, %v511
    %v514 = vunpack.c.l.s4 1934713408
    %v515 = vunpack.c.0.s8 %v514
    %v516 = vperm.slane %v508, %v515
    %v517 = vrot.slane %v480, 4
    %v518 = vsel %vm213, %v517, %v468
    %v519 = vrot.slane %v468, 4
    %v520 = vsel %vm213, %v480, %v519
    %v522 = vunpack.c.l.s4 1934713408
    %v523 = vunpack.c.0.s8 %v522
    %v524 = vperm.slane %v518, %v523
    %v526 = vunpack.c.l.s4 1934713408
    %v527 = vunpack.c.0.s8 %v526
    %v528 = vperm.slane %v520, %v527
    %v529 = vrot.slane %v500, 4
    %v530 = vsel %vm213, %v529, %v488
    %v531 = vrot.slane %v488, 4
    %v532 = vsel %vm213, %v500, %v531
    %v534 = vunpack.c.l.s4 1934713408
    %v535 = vunpack.c.0.s8 %v534
    %v536 = vperm.slane %v530, %v535
    %v538 = vunpack.c.l.s4 1934713408
    %v539 = vunpack.c.0.s8 %v538
    %v540 = vperm.slane %v532, %v539
    %v541 = vrot.slane %v504, 4
    %v542 = vsel %vm213, %v541, %v492
    %v543 = vrot.slane %v492, 4
    %v544 = vsel %vm213, %v504, %v543
    %v546 = vunpack.c.l.s4 1934713408
    %v547 = vunpack.c.0.s8 %v546
    %v548 = vperm.slane %v542, %v547
    %v550 = vunpack.c.l.s4 1934713408
    %v551 = vunpack.c.0.s8 %v550
    %v552 = vperm.slane %v544, %v551
    %v553 = vrot.slane %v536, 4
    %v554 = vsel %vm213, %v553, %v512
    %v555 = vrot.slane %v512, 4
    %v556 = vsel %vm213, %v536, %v555
    %v557 = vrot.slane %v540, 4
    %v558 = vsel %vm213, %v557, %v516
    %v559 = vrot.slane %v516, 4
    %v560 = vsel %vm213, %v540, %v559
    %v561 = vrot.slane %v548, 4
    %v562 = vsel %vm213, %v561, %v524
    %v563 = vrot.slane %v524, 4
    %v564 = vsel %vm213, %v548, %v563
    %v565 = vrot.slane %v552, 4
    %v566 = vsel %vm213, %v565, %v528
    %v567 = vrot.slane %v528, 4
    %v568 = vsel %vm213, %v552, %v567
    %v569 = vrot.slane %v558, 4
    %v570 = vsel %vm213, %v569, %v554
    %v571 = vrot.slane %v554, 4
    %v572 = vsel %vm213, %v558, %v571
    %v574 = vunpack.c.l.s4 1983009808
    %v575 = vunpack.c.0.s8 %v574
    %v576 = vperm.slane %v570, %v575
    %v578 = vunpack.c.l.s4 1983009808
    %v579 = vunpack.c.0.s8 %v578
    %v580 = vperm.slane %v572, %v579
    %v581 = vrot.slane %v560, 4
    %v582 = vsel %vm213, %v581, %v556
    %v583 = vrot.slane %v556, 4
    %v584 = vsel %vm213, %v560, %v583
    %v586 = vunpack.c.l.s4 1983009808
    %v587 = vunpack.c.0.s8 %v586
    %v588 = vperm.slane %v582, %v587
    %v590 = vunpack.c.l.s4 1983009808
    %v591 = vunpack.c.0.s8 %v590
    %v592 = vperm.slane %v584, %v591
    %v593 = vrot.slane %v566, 4
    %v594 = vsel %vm213, %v593, %v562
    %v595 = vrot.slane %v562, 4
    %v596 = vsel %vm213, %v566, %v595
    %v598 = vunpack.c.l.s4 1983009808
    %v599 = vunpack.c.0.s8 %v598
    %v600 = vperm.slane %v594, %v599
    %v602 = vunpack.c.l.s4 1983009808
    %v603 = vunpack.c.0.s8 %v602
    %v604 = vperm.slane %v596, %v603
    %v605 = vrot.slane %v568, 4
    %v606 = vsel %vm213, %v605, %v564
    %v607 = vrot.slane %v564, 4
    %v608 = vsel %vm213, %v568, %v607
    %v610 = vunpack.c.l.s4 1983009808
    %v611 = vunpack.c.0.s8 %v610
    %v612 = vperm.slane %v606, %v611
    %v614 = vunpack.c.l.s4 1983009808
    %v615 = vunpack.c.0.s8 %v614
    %v616 = vperm.slane %v608, %v615
    %v617 = vrot.slane %v588, 4
    %v618 = vsel %vm213, %v617, %v576
    %v619 = vrot.slane %v576, 4
    %v620 = vsel %vm213, %v588, %v619
    %v622 = vunpack.c.l.s4 1934713408
    %v623 = vunpack.c.0.s8 %v622
    %v624 = vperm.slane %v618, %v623
    %v626 = vunpack.c.l.s4 1934713408
    %v627 = vunpack.c.0.s8 %v626
    %v628 = vperm.slane %v620, %v627
    %v629 = vrot.slane %v592, 4
    %v630 = vsel %vm213, %v629, %v580
    %v631 = vrot.slane %v580, 4
    %v632 = vsel %vm213, %v592, %v631
    %v634 = vunpack.c.l.s4 1934713408
    %v635 = vunpack.c.0.s8 %v634
    %v636 = vperm.slane %v630, %v635
    %v638 = vunpack.c.l.s4 1934713408
    %v639 = vunpack.c.0.s8 %v638
    %v640 = vperm.slane %v632, %v639
    %v641 = vrot.slane %v612, 4
    %v642 = vsel %vm213, %v641, %v600
    %v643 = vrot.slane %v600, 4
    %v644 = vsel %vm213, %v612, %v643
    %v646 = vunpack.c.l.s4 1934713408
    %v647 = vunpack.c.0.s8 %v646
    %v648 = vperm.slane %v642, %v647
    %v650 = vunpack.c.l.s4 1934713408
    %v651 = vunpack.c.0.s8 %v650
    %v652 = vperm.slane %v644, %v651
    %v653 = vrot.slane %v616, 4
    %v654 = vsel %vm213, %v653, %v604
    %v655 = vrot.slane %v604, 4
    %v656 = vsel %vm213, %v616, %v655
    %v658 = vunpack.c.l.s4 1934713408
    %v659 = vunpack.c.0.s8 %v658
    %v660 = vperm.slane %v654, %v659
    %v662 = vunpack.c.l.s4 1934713408
    %v663 = vunpack.c.0.s8 %v662
    %v664 = vperm.slane %v656, %v663
    %v665 = vrot.slane %v648, 4
    %v666 = vsel %vm213, %v665, %v624
    %v667 = vrot.slane %v624, 4
    %v668 = vsel %vm213, %v648, %v667
    %v669 = vrot.slane %v652, 4
    %v670 = vsel %vm213, %v669, %v628
    %v671 = vrot.slane %v628, 4
    %v672 = vsel %vm213, %v652, %v671
    %v673 = vrot.slane %v660, 4
    %v674 = vsel %vm213, %v673, %v636
    %v675 = vrot.slane %v636, 4
    %v676 = vsel %vm213, %v660, %v675
    %v677 = vrot.slane %v664, 4
    %v678 = vsel %vm213, %v677, %v640
    %v679 = vrot.slane %v640, 4
    %v680 = vsel %vm213, %v664, %v679
    %682 = vrot.lane.b32.xlu0 %v170, 96
    %v683 = vpop.permute.xlu0 %682
    %685 = vrot.lane.b32.xlu0 %v170, 64
    %v686 = vpop.permute.xlu0 %685
    %688 = vrot.lane.b32.xlu0 %v170, 32
    %v689 = vpop.permute.xlu0 %688
    %692 = vrot.lane.b32.xlu0 %v190, 96
    %v693 = vpop.permute.xlu0 %692
    %695 = vrot.lane.b32.xlu0 %v190, 64
    %v696 = vpop.permute.xlu0 %695
    %698 = vrot.lane.b32.xlu0 %v190, 32
    %v699 = vpop.permute.xlu0 %698
    %v701 = vrot.slane %v686, 4
    %v702 = vsel %vm213, %v701, %v170
    %v703 = vrot.slane %v170, 4
    %v704 = vsel %vm213, %v686, %v703
    %v706 = vunpack.c.l.s4 1983009808
    %v707 = vunpack.c.0.s8 %v706
    %v708 = vperm.slane %v702, %v707
    %v710 = vunpack.c.l.s4 1983009808
    %v711 = vunpack.c.0.s8 %v710
    %v712 = vperm.slane %v704, %v711
    %v713 = vrot.slane %v689, 4
    %v714 = vsel %vm213, %v713, %v683
    %v715 = vrot.slane %v683, 4
    %v716 = vsel %vm213, %v689, %v715
    %v718 = vunpack.c.l.s4 1983009808
    %v719 = vunpack.c.0.s8 %v718
    %v720 = vperm.slane %v714, %v719
    %v722 = vunpack.c.l.s4 1983009808
    %v723 = vunpack.c.0.s8 %v722
    %v724 = vperm.slane %v716, %v723
    %v725 = vrot.slane %v696, 4
    %v726 = vsel %vm213, %v725, %v190
    %v727 = vrot.slane %v190, 4
    %v728 = vsel %vm213, %v696, %v727
    %v730 = vunpack.c.l.s4 1983009808
    %v731 = vunpack.c.0.s8 %v730
    %v732 = vperm.slane %v726, %v731
    %v734 = vunpack.c.l.s4 1983009808
    %v735 = vunpack.c.0.s8 %v734
    %v736 = vperm.slane %v728, %v735
    %v737 = vrot.slane %v699, 4
    %v738 = vsel %vm213, %v737, %v693
    %v739 = vrot.slane %v693, 4
    %v740 = vsel %vm213, %v699, %v739
    %v742 = vunpack.c.l.s4 1983009808
    %v743 = vunpack.c.0.s8 %v742
    %v744 = vperm.slane %v738, %v743
    %v746 = vunpack.c.l.s4 1983009808
    %v747 = vunpack.c.0.s8 %v746
    %v748 = vperm.slane %v740, %v747
    %v749 = vrot.slane %v720, 4
    %v750 = vsel %vm213, %v749, %v708
    %v751 = vrot.slane %v708, 4
    %v752 = vsel %vm213, %v720, %v751
    %v754 = vunpack.c.l.s4 1934713408
    %v755 = vunpack.c.0.s8 %v754
    %v756 = vperm.slane %v750, %v755
    %v758 = vunpack.c.l.s4 1934713408
    %v759 = vunpack.c.0.s8 %v758
    %v760 = vperm.slane %v752, %v759
    %v761 = vrot.slane %v724, 4
    %v762 = vsel %vm213, %v761, %v712
    %v763 = vrot.slane %v712, 4
    %v764 = vsel %vm213, %v724, %v763
    %v766 = vunpack.c.l.s4 1934713408
    %v767 = vunpack.c.0.s8 %v766
    %v768 = vperm.slane %v762, %v767
    %v770 = vunpack.c.l.s4 1934713408
    %v771 = vunpack.c.0.s8 %v770
    %v772 = vperm.slane %v764, %v771
    %v773 = vrot.slane %v744, 4
    %v774 = vsel %vm213, %v773, %v732
    %v775 = vrot.slane %v732, 4
    %v776 = vsel %vm213, %v744, %v775
    %v778 = vunpack.c.l.s4 1934713408
    %v779 = vunpack.c.0.s8 %v778
    %v780 = vperm.slane %v774, %v779
    %v782 = vunpack.c.l.s4 1934713408
    %v783 = vunpack.c.0.s8 %v782
    %v784 = vperm.slane %v776, %v783
    %v785 = vrot.slane %v748, 4
    %v786 = vsel %vm213, %v785, %v736
    %v787 = vrot.slane %v736, 4
    %v788 = vsel %vm213, %v748, %v787
    %v790 = vunpack.c.l.s4 1934713408
    %v791 = vunpack.c.0.s8 %v790
    %v792 = vperm.slane %v786, %v791
    %v794 = vunpack.c.l.s4 1934713408
    %v795 = vunpack.c.0.s8 %v794
    %v796 = vperm.slane %v788, %v795
    %v797 = vrot.slane %v780, 4
    %v798 = vsel %vm213, %v797, %v756
    %v799 = vrot.slane %v756, 4
    %v800 = vsel %vm213, %v780, %v799
    %v801 = vrot.slane %v784, 4
    %v802 = vsel %vm213, %v801, %v760
    %v803 = vrot.slane %v760, 4
    %v804 = vsel %vm213, %v784, %v803
    %v805 = vrot.slane %v792, 4
    %v806 = vsel %vm213, %v805, %v768
    %v807 = vrot.slane %v768, 4
    %v808 = vsel %vm213, %v792, %v807
    %v809 = vrot.slane %v796, 4
    %v810 = vsel %vm213, %v809, %v772
    %v811 = vrot.slane %v772, 4
    %v812 = vsel %vm213, %v796, %v811
    %v813 = vrot.slane %v802, 4
    %v814 = vsel %vm213, %v813, %v798
    %v815 = vrot.slane %v798, 4
    %v816 = vsel %vm213, %v802, %v815
    %v818 = vunpack.c.l.s4 1983009808
    %v819 = vunpack.c.0.s8 %v818
    %v820 = vperm.slane %v814, %v819
    %v822 = vunpack.c.l.s4 1983009808
    %v823 = vunpack.c.0.s8 %v822
    %v824 = vperm.slane %v816, %v823
    %v825 = vrot.slane %v804, 4
    %v826 = vsel %vm213, %v825, %v800
    %v827 = vrot.slane %v800, 4
    %v828 = vsel %vm213, %v804, %v827
    %v830 = vunpack.c.l.s4 1983009808
    %v831 = vunpack.c.0.s8 %v830
    %v832 = vperm.slane %v826, %v831
    %v834 = vunpack.c.l.s4 1983009808
    %v835 = vunpack.c.0.s8 %v834
    %v836 = vperm.slane %v828, %v835
    %v837 = vrot.slane %v810, 4
    %v838 = vsel %vm213, %v837, %v806
    %v839 = vrot.slane %v806, 4
    %v840 = vsel %vm213, %v810, %v839
    %v842 = vunpack.c.l.s4 1983009808
    %v843 = vunpack.c.0.s8 %v842
    %v844 = vperm.slane %v838, %v843
    %v846 = vunpack.c.l.s4 1983009808
    %v847 = vunpack.c.0.s8 %v846
    %v848 = vperm.slane %v840, %v847
    %v849 = vrot.slane %v812, 4
    %v850 = vsel %vm213, %v849, %v808
    %v851 = vrot.slane %v808, 4
    %v852 = vsel %vm213, %v812, %v851
    %v854 = vunpack.c.l.s4 1983009808
    %v855 = vunpack.c.0.s8 %v854
    %v856 = vperm.slane %v850, %v855
    %v858 = vunpack.c.l.s4 1983009808
    %v859 = vunpack.c.0.s8 %v858
    %v860 = vperm.slane %v852, %v859
    %v861 = vrot.slane %v832, 4
    %v862 = vsel %vm213, %v861, %v820
    %v863 = vrot.slane %v820, 4
    %v864 = vsel %vm213, %v832, %v863
    %v866 = vunpack.c.l.s4 1934713408
    %v867 = vunpack.c.0.s8 %v866
    %v868 = vperm.slane %v862, %v867
    %v870 = vunpack.c.l.s4 1934713408
    %v871 = vunpack.c.0.s8 %v870
    %v872 = vperm.slane %v864, %v871
    %v873 = vrot.slane %v836, 4
    %v874 = vsel %vm213, %v873, %v824
    %v875 = vrot.slane %v824, 4
    %v876 = vsel %vm213, %v836, %v875
    %v878 = vunpack.c.l.s4 1934713408
    %v879 = vunpack.c.0.s8 %v878
    %v880 = vperm.slane %v874, %v879
    %v882 = vunpack.c.l.s4 1934713408
    %v883 = vunpack.c.0.s8 %v882
    %v884 = vperm.slane %v876, %v883
    %v885 = vrot.slane %v856, 4
    %v886 = vsel %vm213, %v885, %v844
    %v887 = vrot.slane %v844, 4
    %v888 = vsel %vm213, %v856, %v887
    %v890 = vunpack.c.l.s4 1934713408
    %v891 = vunpack.c.0.s8 %v890
    %v892 = vperm.slane %v886, %v891
    %v894 = vunpack.c.l.s4 1934713408
    %v895 = vunpack.c.0.s8 %v894
    %v896 = vperm.slane %v888, %v895
    %v897 = vrot.slane %v860, 4
    %v898 = vsel %vm213, %v897, %v848
    %v899 = vrot.slane %v848, 4
    %v900 = vsel %vm213, %v860, %v899
    %v902 = vunpack.c.l.s4 1934713408
    %v903 = vunpack.c.0.s8 %v902
    %v904 = vperm.slane %v898, %v903
    %v906 = vunpack.c.l.s4 1934713408
    %v907 = vunpack.c.0.s8 %v906
    %v908 = vperm.slane %v900, %v907
    %v909 = vrot.slane %v892, 4
    %v910 = vsel %vm213, %v909, %v868
    %v911 = vrot.slane %v868, 4
    %v912 = vsel %vm213, %v892, %v911
    %v913 = vrot.slane %v896, 4
    %v914 = vsel %vm213, %v913, %v872
    %v915 = vrot.slane %v872, 4
    %v916 = vsel %vm213, %v896, %v915
    %v917 = vrot.slane %v904, 4
    %v918 = vsel %vm213, %v917, %v880
    %v919 = vrot.slane %v880, 4
    %v920 = vsel %vm213, %v904, %v919
    %v921 = vrot.slane %v908, 4
    %v922 = vsel %vm213, %v921, %v884
    %v923 = vrot.slane %v884, 4
    %v924 = vsel %vm213, %v908, %v923
    %v926 = vsel %vm65, %v422, 0
    %v929 = vsel %vm65, %v666, 0
    %931 = vmatpush.xpose.msra.mxu0 0.0
    %932 = vmatpush.xpose.msra.mxu0 0.0
    %933 = vmatpush.xpose.msra.mxu0 0.0
    %934 = vmatpush.xpose.msra.mxu0 0.0
    %935 = vmatpush.xpose.msra.mxu0 0.0
    %936 = vmatpush.xpose.msra.mxu0 0.0
    %937 = vmatpush.xpose.msra.mxu0 0.0
    %938 = vmatpush.xpose.msra.mxu0 0.0
    %939 = vmatpush.xpose.msra.mxu0 0.0
    %940 = vmatpush.xpose.msra.mxu0 0.0
    %941 = vmatpush.xpose.msra.mxu0 0.0
    %942 = vmatpush.xpose.msra.mxu0 0.0
    %943 = vmatpush.xpose.msra.mxu0 0.0
    %944 = vmatpush.xpose.msra.mxu0 0.0
    %945 = vmatpush.xpose.msra.mxu0 0.0
    %946 = vmatpush.xpose.msra.mxu0 %v929
    %947 = vmatmul.f32.gmra.mxu0 %v926
    %v948 = vpop.f32.mrf.mxu0
    %v949 = vadd.f32 0.0, %v948
    %950 = vdwg.mxu0
    %v952 = vsel %vm65, %v424, 0
    %v955 = vsel %vm65, %v668, 0
    %957 = vmatpush.xpose.msra.mxu0 0.0
    %958 = vmatpush.xpose.msra.mxu0 0.0
    %959 = vmatpush.xpose.msra.mxu0 0.0
    %960 = vmatpush.xpose.msra.mxu0 0.0
    %961 = vmatpush.xpose.msra.mxu0 0.0
    %962 = vmatpush.xpose.msra.mxu0 0.0
    %963 = vmatpush.xpose.msra.mxu0 0.0
    %964 = vmatpush.xpose.msra.mxu0 0.0
    %965 = vmatpush.xpose.msra.mxu0 0.0
    %966 = vmatpush.xpose.msra.mxu0 0.0
    %967 = vmatpush.xpose.msra.mxu0 0.0
    %968 = vmatpush.xpose.msra.mxu0 0.0
    %969 = vmatpush.xpose.msra.mxu0 0.0
    %970 = vmatpush.xpose.msra.mxu0 0.0
    %971 = vmatpush.xpose.msra.mxu0 0.0
    %972 = vmatpush.xpose.msra.mxu0 %v955
    %973 = vmatmul.f32.gmra.mxu0 %v952
    %v974 = vpop.f32.mrf.mxu0
    %v975 = vadd.f32 0.0, %v974
    %976 = vdwg.mxu0
    %v978 = vsel %vm65, %v426, 0
    %v981 = vsel %vm65, %v670, 0
    %983 = vmatpush.xpose.msra.mxu0 0.0
    %984 = vmatpush.xpose.msra.mxu0 0.0
    %985 = vmatpush.xpose.msra.mxu0 0.0
    %986 = vmatpush.xpose.msra.mxu0 0.0
    %987 = vmatpush.xpose.msra.mxu0 0.0
    %988 = vmatpush.xpose.msra.mxu0 0.0
    %989 = vmatpush.xpose.msra.mxu0 0.0
    %990 = vmatpush.xpose.msra.mxu0 0.0
    %991 = vmatpush.xpose.msra.mxu0 0.0
    %992 = vmatpush.xpose.msra.mxu0 0.0
    %993 = vmatpush.xpose.msra.mxu0 0.0
    %994 = vmatpush.xpose.msra.mxu0 0.0
    %995 = vmatpush.xpose.msra.mxu0 0.0
    %996 = vmatpush.xpose.msra.mxu0 0.0
    %997 = vmatpush.xpose.msra.mxu0 0.0
    %998 = vmatpush.xpose.msra.mxu0 %v981
    %999 = vmatmul.f32.gmra.mxu0 %v978
    %v1000 = vpop.f32.mrf.mxu0
    %v1001 = vadd.f32 0.0, %v1000
    %1002 = vdwg.mxu0
    %v1004 = vsel %vm65, %v428, 0
    %v1007 = vsel %vm65, %v672, 0
    %1009 = vmatpush.xpose.msra.mxu0 0.0
    %1010 = vmatpush.xpose.msra.mxu0 0.0
    %1011 = vmatpush.xpose.msra.mxu0 0.0
    %1012 = vmatpush.xpose.msra.mxu0 0.0
    %1013 = vmatpush.xpose.msra.mxu0 0.0
    %1014 = vmatpush.xpose.msra.mxu0 0.0
    %1015 = vmatpush.xpose.msra.mxu0 0.0
    %1016 = vmatpush.xpose.msra.mxu0 0.0
    %1017 = vmatpush.xpose.msra.mxu0 0.0
    %1018 = vmatpush.xpose.msra.mxu0 0.0
    %1019 = vmatpush.xpose.msra.mxu0 0.0
    %1020 = vmatpush.xpose.msra.mxu0 0.0
    %1021 = vmatpush.xpose.msra.mxu0 0.0
    %1022 = vmatpush.xpose.msra.mxu0 0.0
    %1023 = vmatpush.xpose.msra.mxu0 0.0
    %1024 = vmatpush.xpose.msra.mxu0 %v1007
    %1025 = vmatmul.f32.gmra.mxu0 %v1004
    %v1026 = vpop.f32.mrf.mxu0
    %v1027 = vadd.f32 0.0, %v1026
    %1028 = vdwg.mxu0
    %v1030 = vsel %vm65, %v430, 0
    %v1033 = vsel %vm65, %v674, 0
    %1035 = vmatpush.xpose.msra.mxu0 0.0
    %1036 = vmatpush.xpose.msra.mxu0 0.0
    %1037 = vmatpush.xpose.msra.mxu0 0.0
    %1038 = vmatpush.xpose.msra.mxu0 0.0
    %1039 = vmatpush.xpose.msra.mxu0 0.0
    %1040 = vmatpush.xpose.msra.mxu0 0.0
    %1041 = vmatpush.xpose.msra.mxu0 0.0
    %1042 = vmatpush.xpose.msra.mxu0 0.0
    %1043 = vmatpush.xpose.msra.mxu0 0.0
    %1044 = vmatpush.xpose.msra.mxu0 0.0
    %1045 = vmatpush.xpose.msra.mxu0 0.0
    %1046 = vmatpush.xpose.msra.mxu0 0.0
    %1047 = vmatpush.xpose.msra.mxu0 0.0
    %1048 = vmatpush.xpose.msra.mxu0 0.0
    %1049 = vmatpush.xpose.msra.mxu0 0.0
    %1050 = vmatpush.xpose.msra.mxu0 %v1033
    %1051 = vmatmul.f32.gmra.mxu0 %v1030
    %v1052 = vpop.f32.mrf.mxu0
    %v1053 = vadd.f32 0.0, %v1052
    %1054 = vdwg.mxu0
    %v1056 = vsel %vm65, %v432, 0
    %v1059 = vsel %vm65, %v676, 0
    %1061 = vmatpush.xpose.msra.mxu0 0.0
    %1062 = vmatpush.xpose.msra.mxu0 0.0
    %1063 = vmatpush.xpose.msra.mxu0 0.0
    %1064 = vmatpush.xpose.msra.mxu0 0.0
    %1065 = vmatpush.xpose.msra.mxu0 0.0
    %1066 = vmatpush.xpose.msra.mxu0 0.0
    %1067 = vmatpush.xpose.msra.mxu0 0.0
    %1068 = vmatpush.xpose.msra.mxu0 0.0
    %1069 = vmatpush.xpose.msra.mxu0 0.0
    %1070 = vmatpush.xpose.msra.mxu0 0.0
    %1071 = vmatpush.xpose.msra.mxu0 0.0
    %1072 = vmatpush.xpose.msra.mxu0 0.0
    %1073 = vmatpush.xpose.msra.mxu0 0.0
    %1074 = vmatpush.xpose.msra.mxu0 0.0
    %1075 = vmatpush.xpose.msra.mxu0 0.0
    %1076 = vmatpush.xpose.msra.mxu0 %v1059
    %1077 = vmatmul.f32.gmra.mxu0 %v1056
    %v1078 = vpop.f32.mrf.mxu0
    %v1079 = vadd.f32 0.0, %v1078
    %1080 = vdwg.mxu0
    %v1082 = vsel %vm65, %v434, 0
    %v1085 = vsel %vm65, %v678, 0
    %1087 = vmatpush.xpose.msra.mxu0 0.0
    %1088 = vmatpush.xpose.msra.mxu0 0.0
    %1089 = vmatpush.xpose.msra.mxu0 0.0
    %1090 = vmatpush.xpose.msra.mxu0 0.0
    %1091 = vmatpush.xpose.msra.mxu0 0.0
    %1092 = vmatpush.xpose.msra.mxu0 0.0
    %1093 = vmatpush.xpose.msra.mxu0 0.0
    %1094 = vmatpush.xpose.msra.mxu0 0.0
    %1095 = vmatpush.xpose.msra.mxu0 0.0
    %1096 = vmatpush.xpose.msra.mxu0 0.0
    %1097 = vmatpush.xpose.msra.mxu0 0.0
    %1098 = vmatpush.xpose.msra.mxu0 0.0
    %1099 = vmatpush.xpose.msra.mxu0 0.0
    %1100 = vmatpush.xpose.msra.mxu0 0.0
    %1101 = vmatpush.xpose.msra.mxu0 0.0
    %1102 = vmatpush.xpose.msra.mxu0 %v1085
    %1103 = vmatmul.f32.gmra.mxu0 %v1082
    %v1104 = vpop.f32.mrf.mxu0
    %v1105 = vadd.f32 0.0, %v1104
    %1106 = vdwg.mxu0
    %v1108 = vsel %vm65, %v436, 0
    %v1111 = vsel %vm65, %v680, 0
    %1113 = vmatpush.xpose.msra.mxu0 0.0
    %1114 = vmatpush.xpose.msra.mxu0 0.0
    %1115 = vmatpush.xpose.msra.mxu0 0.0
    %1116 = vmatpush.xpose.msra.mxu0 0.0
    %1117 = vmatpush.xpose.msra.mxu0 0.0
    %1118 = vmatpush.xpose.msra.mxu0 0.0
    %1119 = vmatpush.xpose.msra.mxu0 0.0
    %1120 = vmatpush.xpose.msra.mxu0 0.0
    %1121 = vmatpush.xpose.msra.mxu0 0.0
    %1122 = vmatpush.xpose.msra.mxu0 0.0
    %1123 = vmatpush.xpose.msra.mxu0 0.0
    %1124 = vmatpush.xpose.msra.mxu0 0.0
    %1125 = vmatpush.xpose.msra.mxu0 0.0
    %1126 = vmatpush.xpose.msra.mxu0 0.0
    %1127 = vmatpush.xpose.msra.mxu0 0.0
    %1128 = vmatpush.xpose.msra.mxu0 %v1111
    %1129 = vmatmul.f32.gmra.mxu0 %v1108
    %v1130 = vpop.f32.mrf.mxu0
    %v1131 = vadd.f32 0.0, %v1130
    %1132 = vdwg.mxu0
    %vm1133 = vcmask 64512
    %v1134 = vsel %vm1133, %v949, -inf
    %1135 = vmax.xlane.f32.xlu0 %v1134
    %v1136 = vpop.xlane.xlu0 %1135
    %v1137 = vsel %vm1133, %v975, -inf
    %1138 = vmax.xlane.f32.xlu0 %v1137
    %v1139 = vpop.xlane.xlu0 %1138
    %v1140 = vsel %vm1133, %v1001, -inf
    %1141 = vmax.xlane.f32.xlu0 %v1140
    %v1142 = vpop.xlane.xlu0 %1141
    %v1143 = vsel %vm1133, %v1027, -inf
    %1144 = vmax.xlane.f32.xlu0 %v1143
    %v1145 = vpop.xlane.xlu0 %1144
    %v1146 = vsel %vm1133, %v1053, -inf
    %1147 = vmax.xlane.f32.xlu0 %v1146
    %v1148 = vpop.xlane.xlu0 %1147
    %v1149 = vsel %vm1133, %v1079, -inf
    %1150 = vmax.xlane.f32.xlu0 %v1149
    %v1151 = vpop.xlane.xlu0 %1150
    %v1152 = vsel %vm1133, %v1105, -inf
    %1153 = vmax.xlane.f32.xlu0 %v1152
    %v1154 = vpop.xlane.xlu0 %1153
    %v1155 = vsel %vm1133, %v1131, -inf
    %1156 = vmax.xlane.f32.xlu0 %v1155
    %v1157 = vpop.xlane.xlu0 %1156
    %v1158 = vsub.f32 %v949, %v1136
    %v1159 = vsub.f32 %v975, %v1139
    %v1160 = vsub.f32 %v1001, %v1142
    %v1161 = vsub.f32 %v1027, %v1145
    %v1162 = vsub.f32 %v1053, %v1148
    %v1163 = vsub.f32 %v1079, %v1151
    %v1164 = vsub.f32 %v1105, %v1154
    %v1165 = vsub.f32 %v1131, %v1157
    %v1166 = vmul.f32 %v1158, 1.442695
    %v1167 = vpow.pop %v1166
    %v1168 = vmul.f32 %v1159, 1.442695
    %v1169 = vpow.pop %v1168
    %v1170 = vmul.f32 %v1160, 1.442695
    %v1171 = vpow.pop %v1170
    %v1172 = vmul.f32 %v1161, 1.442695
    %v1173 = vpow.pop %v1172
    %v1174 = vmul.f32 %v1162, 1.442695
    %v1175 = vpow.pop %v1174
    %v1176 = vmul.f32 %v1163, 1.442695
    %v1177 = vpow.pop %v1176
    %v1178 = vmul.f32 %v1164, 1.442695
    %v1179 = vpow.pop %v1178
    %v1180 = vmul.f32 %v1165, 1.442695
    %v1181 = vpow.pop %v1180
    %v1182 = vsel %vm1133, %v1167, 0.0
    %1183 = vadd.xlane.f32.xlu0 %v1182
    %v1184 = vpop.xlane.xlu0 %1183
    %v1185 = vsel %vm1133, %v1169, 0.0
    %1186 = vadd.xlane.f32.xlu0 %v1185
    %v1187 = vpop.xlane.xlu0 %1186
    %v1188 = vsel %vm1133, %v1171, 0.0
    %1189 = vadd.xlane.f32.xlu0 %v1188
    %v1190 = vpop.xlane.xlu0 %1189
    %v1191 = vsel %vm1133, %v1173, 0.0
    %1192 = vadd.xlane.f32.xlu0 %v1191
    %v1193 = vpop.xlane.xlu0 %1192
    %v1194 = vsel %vm1133, %v1175, 0.0
    %1195 = vadd.xlane.f32.xlu0 %v1194
    %v1196 = vpop.xlane.xlu0 %1195
    %v1197 = vsel %vm1133, %v1177, 0.0
    %1198 = vadd.xlane.f32.xlu0 %v1197
    %v1199 = vpop.xlane.xlu0 %1198
    %v1200 = vsel %vm1133, %v1179, 0.0
    %1201 = vadd.xlane.f32.xlu0 %v1200
    %v1202 = vpop.xlane.xlu0 %1201
    %v1203 = vsel %vm1133, %v1181, 0.0
    %1204 = vadd.xlane.f32.xlu0 %v1203
    %v1205 = vpop.xlane.xlu0 %1204
    %v1206 = vrcp.pop %v1184
    %v1207 = vmul.f32 %v1184, %v1206
    %v1208 = vsub.f32 1.0, %v1207
    %v1209 = vmul.f32 %v1206, %v1208
    %v1210 = vadd.f32 %v1206, %v1209
    %vm1211 = vweird.f32 %v1184
    %vm1212 = vweird.f32 %v1206
    %vm1213 = vmor %vm1211, %vm1212
    %v1214 = vsel %vm1213, %v1206, %v1210
    %v1215 = vand.u32 2147483647, %v1184
    %vm1216 = vcmp.eq.f32.partialorder %v1215, 8.507059e+37
    %v1217 = vand.u32 %v1184, 2147483648
    %v1218 = vor.u32 1.1754944e-38, %v1217
    %v1219 = vsel %vm1216, %v1218, %v1214
    %v1220 = vrcp.pop %v1187
    %v1221 = vmul.f32 %v1187, %v1220
    %v1222 = vsub.f32 1.0, %v1221
    %v1223 = vmul.f32 %v1220, %v1222
    %v1224 = vadd.f32 %v1220, %v1223
    %vm1225 = vweird.f32 %v1187
    %vm1226 = vweird.f32 %v1220
    %vm1227 = vmor %vm1225, %vm1226
    %v1228 = vsel %vm1227, %v1220, %v1224
    %v1229 = vand.u32 2147483647, %v1187
    %vm1230 = vcmp.eq.f32.partialorder %v1229, 8.507059e+37
    %v1231 = vand.u32 %v1187, 2147483648
    %v1232 = vor.u32 1.1754944e-38, %v1231
    %v1233 = vsel %vm1230, %v1232, %v1228
    %v1234 = vrcp.pop %v1190
    %v1235 = vmul.f32 %v1190, %v1234
    %v1236 = vsub.f32 1.0, %v1235
    %v1237 = vmul.f32 %v1234, %v1236
    %v1238 = vadd.f32 %v1234, %v1237
    %vm1239 = vweird.f32 %v1190
    %vm1240 = vweird.f32 %v1234
    %vm1241 = vmor %vm1239, %vm1240
    %v1242 = vsel %vm1241, %v1234, %v1238
    %v1243 = vand.u32 2147483647, %v1190
    %vm1244 = vcmp.eq.f32.partialorder %v1243, 8.507059e+37
    %v1245 = vand.u32 %v1190, 2147483648
    %v1246 = vor.u32 1.1754944e-38, %v1245
    %v1247 = vsel %vm1244, %v1246, %v1242
    %v1248 = vrcp.pop %v1193
    %v1249 = vmul.f32 %v1193, %v1248
    %v1250 = vsub.f32 1.0, %v1249
    %v1251 = vmul.f32 %v1248, %v1250
    %v1252 = vadd.f32 %v1248, %v1251
    %vm1253 = vweird.f32 %v1193
    %vm1254 = vweird.f32 %v1248
    %vm1255 = vmor %vm1253, %vm1254
    %v1256 = vsel %vm1255, %v1248, %v1252
    %v1257 = vand.u32 2147483647, %v1193
    %vm1258 = vcmp.eq.f32.partialorder %v1257, 8.507059e+37
    %v1259 = vand.u32 %v1193, 2147483648
    %v1260 = vor.u32 1.1754944e-38, %v1259
    %v1261 = vsel %vm1258, %v1260, %v1256
    %v1262 = vrcp.pop %v1196
    %v1263 = vmul.f32 %v1196, %v1262
    %v1264 = vsub.f32 1.0, %v1263
    %v1265 = vmul.f32 %v1262, %v1264
    %v1266 = vadd.f32 %v1262, %v1265
    %vm1267 = vweird.f32 %v1196
    %vm1268 = vweird.f32 %v1262
    %vm1269 = vmor %vm1267, %vm1268
    %v1270 = vsel %vm1269, %v1262, %v1266
    %v1271 = vand.u32 2147483647, %v1196
    %vm1272 = vcmp.eq.f32.partialorder %v1271, 8.507059e+37
    %v1273 = vand.u32 %v1196, 2147483648
    %v1274 = vor.u32 1.1754944e-38, %v1273
    %v1275 = vsel %vm1272, %v1274, %v1270
    %v1276 = vrcp.pop %v1199
    %v1277 = vmul.f32 %v1199, %v1276
    %v1278 = vsub.f32 1.0, %v1277
    %v1279 = vmul.f32 %v1276, %v1278
    %v1280 = vadd.f32 %v1276, %v1279
    %vm1281 = vweird.f32 %v1199
    %vm1282 = vweird.f32 %v1276
    %vm1283 = vmor %vm1281, %vm1282
    %v1284 = vsel %vm1283, %v1276, %v1280
    %v1285 = vand.u32 2147483647, %v1199
    %vm1286 = vcmp.eq.f32.partialorder %v1285, 8.507059e+37
    %v1287 = vand.u32 %v1199, 2147483648
    %v1288 = vor.u32 1.1754944e-38, %v1287
    %v1289 = vsel %vm1286, %v1288, %v1284
    %v1290 = vrcp.pop %v1202
    %v1291 = vmul.f32 %v1202, %v1290
    %v1292 = vsub.f32 1.0, %v1291
    %v1293 = vmul.f32 %v1290, %v1292
    %v1294 = vadd.f32 %v1290, %v1293
    %vm1295 = vweird.f32 %v1202
    %vm1296 = vweird.f32 %v1290
    %vm1297 = vmor %vm1295, %vm1296
    %v1298 = vsel %vm1297, %v1290, %v1294
    %v1299 = vand.u32 2147483647, %v1202
    %vm1300 = vcmp.eq.f32.partialorder %v1299, 8.507059e+37
    %v1301 = vand.u32 %v1202, 2147483648
    %v1302 = vor.u32 1.1754944e-38, %v1301
    %v1303 = vsel %vm1300, %v1302, %v1298
    %v1304 = vrcp.pop %v1205
    %v1305 = vmul.f32 %v1205, %v1304
    %v1306 = vsub.f32 1.0, %v1305
    %v1307 = vmul.f32 %v1304, %v1306
    %v1308 = vadd.f32 %v1304, %v1307
    %vm1309 = vweird.f32 %v1205
    %vm1310 = vweird.f32 %v1304
    %vm1311 = vmor %vm1309, %vm1310
    %v1312 = vsel %vm1311, %v1304, %v1308
    %v1313 = vand.u32 2147483647, %v1205
    %vm1314 = vcmp.eq.f32.partialorder %v1313, 8.507059e+37
    %v1315 = vand.u32 %v1205, 2147483648
    %v1316 = vor.u32 1.1754944e-38, %v1315
    %v1317 = vsel %vm1314, %v1316, %v1312
    %v1318 = vmul.f32 %v1167, %v1219
    %v1319 = vmul.f32 %v1169, %v1233
    %v1320 = vmul.f32 %v1171, %v1247
    %v1321 = vmul.f32 %v1173, %v1261
    %v1322 = vmul.f32 %v1175, %v1275
    %v1323 = vmul.f32 %v1177, %v1289
    %v1324 = vmul.f32 %v1179, %v1303
    %v1325 = vmul.f32 %v1181, %v1317
    %v1327 = vsel %vm1133, %v1318, 0
    %1329 = vmatpush.msra.mxu0 0.0
    %1330 = vmatpush.msra.mxu0 0.0
    %1331 = vmatpush.msra.mxu0 0.0
    %1332 = vmatpush.msra.mxu0 0.0
    %1333 = vmatpush.msra.mxu0 0.0
    %1334 = vmatpush.msra.mxu0 0.0
    %1335 = vmatpush.msra.mxu0 0.0
    %1336 = vmatpush.msra.mxu0 0.0
    %1337 = vmatpush.msra.mxu0 0.0
    %1338 = vmatpush.msra.mxu0 0.0
    %1339 = vmatpush.msra.mxu0 0.0
    %1340 = vmatpush.msra.mxu0 0.0
    %1341 = vmatpush.msra.mxu0 0.0
    %1342 = vmatpush.msra.mxu0 0.0
    %1343 = vmatpush.msra.mxu0 0.0
    %1344 = vmatpush.msra.mxu0 %v910
    %1345 = vmatmul.f32.gmra.mxu0 %v1327
    %v1346 = vpop.f32.mrf.mxu0
    %v1347 = vadd.f32 0.0, %v1346
    %1348 = vdwg.mxu0
    %v1350 = vsel %vm1133, %v1319, 0
    %1352 = vmatpush.msra.mxu0 0.0
    %1353 = vmatpush.msra.mxu0 0.0
    %1354 = vmatpush.msra.mxu0 0.0
    %1355 = vmatpush.msra.mxu0 0.0
    %1356 = vmatpush.msra.mxu0 0.0
    %1357 = vmatpush.msra.mxu0 0.0
    %1358 = vmatpush.msra.mxu0 0.0
    %1359 = vmatpush.msra.mxu0 0.0
    %1360 = vmatpush.msra.mxu0 0.0
    %1361 = vmatpush.msra.mxu0 0.0
    %1362 = vmatpush.msra.mxu0 0.0
    %1363 = vmatpush.msra.mxu0 0.0
    %1364 = vmatpush.msra.mxu0 0.0
    %1365 = vmatpush.msra.mxu0 0.0
    %1366 = vmatpush.msra.mxu0 0.0
    %1367 = vmatpush.msra.mxu0 %v912
    %1368 = vmatmul.f32.gmra.mxu0 %v1350
    %v1369 = vpop.f32.mrf.mxu0
    %v1370 = vadd.f32 0.0, %v1369
    %1371 = vdwg.mxu0
    %v1373 = vsel %vm1133, %v1320, 0
    %1375 = vmatpush.msra.mxu0 0.0
    %1376 = vmatpush.msra.mxu0 0.0
    %1377 = vmatpush.msra.mxu0 0.0
    %1378 = vmatpush.msra.mxu0 0.0
    %1379 = vmatpush.msra.mxu0 0.0
    %1380 = vmatpush.msra.mxu0 0.0
    %1381 = vmatpush.msra.mxu0 0.0
    %1382 = vmatpush.msra.mxu0 0.0
    %1383 = vmatpush.msra.mxu0 0.0
    %1384 = vmatpush.msra.mxu0 0.0
    %1385 = vmatpush.msra.mxu0 0.0
    %1386 = vmatpush.msra.mxu0 0.0
    %1387 = vmatpush.msra.mxu0 0.0
    %1388 = vmatpush.msra.mxu0 0.0
    %1389 = vmatpush.msra.mxu0 0.0
    %1390 = vmatpush.msra.mxu0 %v914
    %1391 = vmatmul.f32.gmra.mxu0 %v1373
    %v1392 = vpop.f32.mrf.mxu0
    %v1393 = vadd.f32 0.0, %v1392
    %1394 = vdwg.mxu0
    %v1396 = vsel %vm1133, %v1321, 0
    %1398 = vmatpush.msra.mxu0 0.0
    %1399 = vmatpush.msra.mxu0 0.0
    %1400 = vmatpush.msra.mxu0 0.0
    %1401 = vmatpush.msra.mxu0 0.0
    %1402 = vmatpush.msra.mxu0 0.0
    %1403 = vmatpush.msra.mxu0 0.0
    %1404 = vmatpush.msra.mxu0 0.0
    %1405 = vmatpush.msra.mxu0 0.0
    %1406 = vmatpush.msra.mxu0 0.0
    %1407 = vmatpush.msra.mxu0 0.0
    %1408 = vmatpush.msra.mxu0 0.0
    %1409 = vmatpush.msra.mxu0 0.0
    %1410 = vmatpush.msra.mxu0 0.0
    %1411 = vmatpush.msra.mxu0 0.0
    %1412 = vmatpush.msra.mxu0 0.0
    %1413 = vmatpush.msra.mxu0 %v916
    %1414 = vmatmul.f32.gmra.mxu0 %v1396
    %v1415 = vpop.f32.mrf.mxu0
    %v1416 = vadd.f32 0.0, %v1415
    %1417 = vdwg.mxu0
    %v1419 = vsel %vm1133, %v1322, 0
    %1421 = vmatpush.msra.mxu0 0.0
    %1422 = vmatpush.msra.mxu0 0.0
    %1423 = vmatpush.msra.mxu0 0.0
    %1424 = vmatpush.msra.mxu0 0.0
    %1425 = vmatpush.msra.mxu0 0.0
    %1426 = vmatpush.msra.mxu0 0.0
    %1427 = vmatpush.msra.mxu0 0.0
    %1428 = vmatpush.msra.mxu0 0.0
    %1429 = vmatpush.msra.mxu0 0.0
    %1430 = vmatpush.msra.mxu0 0.0
    %1431 = vmatpush.msra.mxu0 0.0
    %1432 = vmatpush.msra.mxu0 0.0
    %1433 = vmatpush.msra.mxu0 0.0
    %1434 = vmatpush.msra.mxu0 0.0
    %1435 = vmatpush.msra.mxu0 0.0
    %1436 = vmatpush.msra.mxu0 %v918
    %1437 = vmatmul.f32.gmra.mxu0 %v1419
    %v1438 = vpop.f32.mrf.mxu0
    %v1439 = vadd.f32 0.0, %v1438
    %1440 = vdwg.mxu0
    %v1442 = vsel %vm1133, %v1323, 0
    %1444 = vmatpush.msra.mxu0 0.0
    %1445 = vmatpush.msra.mxu0 0.0
    %1446 = vmatpush.msra.mxu0 0.0
    %1447 = vmatpush.msra.mxu0 0.0
    %1448 = vmatpush.msra.mxu0 0.0
    %1449 = vmatpush.msra.mxu0 0.0
    %1450 = vmatpush.msra.mxu0 0.0
    %1451 = vmatpush.msra.mxu0 0.0
    %1452 = vmatpush.msra.mxu0 0.0
    %1453 = vmatpush.msra.mxu0 0.0
    %1454 = vmatpush.msra.mxu0 0.0
    %1455 = vmatpush.msra.mxu0 0.0
    %1456 = vmatpush.msra.mxu0 0.0
    %1457 = vmatpush.msra.mxu0 0.0
    %1458 = vmatpush.msra.mxu0 0.0
    %1459 = vmatpush.msra.mxu0 %v920
    %1460 = vmatmul.f32.gmra.mxu0 %v1442
    %v1461 = vpop.f32.mrf.mxu0
    %v1462 = vadd.f32 0.0, %v1461
    %1463 = vdwg.mxu0
    %v1465 = vsel %vm1133, %v1324, 0
    %1467 = vmatpush.msra.mxu0 0.0
    %1468 = vmatpush.msra.mxu0 0.0
    %1469 = vmatpush.msra.mxu0 0.0
    %1470 = vmatpush.msra.mxu0 0.0
    %1471 = vmatpush.msra.mxu0 0.0
    %1472 = vmatpush.msra.mxu0 0.0
    %1473 = vmatpush.msra.mxu0 0.0
    %1474 = vmatpush.msra.mxu0 0.0
    %1475 = vmatpush.msra.mxu0 0.0
    %1476 = vmatpush.msra.mxu0 0.0
    %1477 = vmatpush.msra.mxu0 0.0
    %1478 = vmatpush.msra.mxu0 0.0
    %1479 = vmatpush.msra.mxu0 0.0
    %1480 = vmatpush.msra.mxu0 0.0
    %1481 = vmatpush.msra.mxu0 0.0
    %1482 = vmatpush.msra.mxu0 %v922
    %1483 = vmatmul.f32.gmra.mxu0 %v1465
    %v1484 = vpop.f32.mrf.mxu0
    %v1485 = vadd.f32 0.0, %v1484
    %1486 = vdwg.mxu0
    %v1488 = vsel %vm1133, %v1325, 0
    %1490 = vmatpush.msra.mxu0 0.0
    %1491 = vmatpush.msra.mxu0 0.0
    %1492 = vmatpush.msra.mxu0 0.0
    %1493 = vmatpush.msra.mxu0 0.0
    %1494 = vmatpush.msra.mxu0 0.0
    %1495 = vmatpush.msra.mxu0 0.0
    %1496 = vmatpush.msra.mxu0 0.0
    %1497 = vmatpush.msra.mxu0 0.0
    %1498 = vmatpush.msra.mxu0 0.0
    %1499 = vmatpush.msra.mxu0 0.0
    %1500 = vmatpush.msra.mxu0 0.0
    %1501 = vmatpush.msra.mxu0 0.0
    %1502 = vmatpush.msra.mxu0 0.0
    %1503 = vmatpush.msra.mxu0 0.0
    %1504 = vmatpush.msra.mxu0 0.0
    %1505 = vmatpush.msra.mxu0 %v924
    %1506 = vmatmul.f32.gmra.mxu0 %v1488
    %v1507 = vpop.f32.mrf.mxu0
    %v1508 = vadd.f32 0.0, %v1507
    %1509 = vdwg.mxu0
    %v1510 = vrot.slane %v1393, 4
    %v1511 = vsel %vm213, %v1510, %v1347
    %v1512 = vrot.slane %v1347, 4
    %v1513 = vsel %vm213, %v1393, %v1512
    %v1515 = vunpack.c.l.s4 1983009808
    %v1516 = vunpack.c.0.s8 %v1515
    %v1517 = vperm.slane %v1511, %v1516
    %v1519 = vunpack.c.l.s4 1983009808
    %v1520 = vunpack.c.0.s8 %v1519
    %v1521 = vperm.slane %v1513, %v1520
    %v1522 = vrot.slane %v1416, 4
    %v1523 = vsel %vm213, %v1522, %v1370
    %v1524 = vrot.slane %v1370, 4
    %v1525 = vsel %vm213, %v1416, %v1524
    %v1527 = vunpack.c.l.s4 1983009808
    %v1528 = vunpack.c.0.s8 %v1527
    %v1529 = vperm.slane %v1523, %v1528
    %v1531 = vunpack.c.l.s4 1983009808
    %v1532 = vunpack.c.0.s8 %v1531
    %v1533 = vperm.slane %v1525, %v1532
    %v1534 = vrot.slane %v1485, 4
    %v1535 = vsel %vm213, %v1534, %v1439
    %v1536 = vrot.slane %v1439, 4
    %v1537 = vsel %vm213, %v1485, %v1536
    %v1539 = vunpack.c.l.s4 1983009808
    %v1540 = vunpack.c.0.s8 %v1539
    %v1541 = vperm.slane %v1535, %v1540
    %v1543 = vunpack.c.l.s4 1983009808
    %v1544 = vunpack.c.0.s8 %v1543
    %v1545 = vperm.slane %v1537, %v1544
    %v1546 = vrot.slane %v1508, 4
    %v1547 = vsel %vm213, %v1546, %v1462
    %v1548 = vrot.slane %v1462, 4
    %v1549 = vsel %vm213, %v1508, %v1548
    %v1551 = vunpack.c.l.s4 1983009808
    %v1552 = vunpack.c.0.s8 %v1551
    %v1553 = vperm.slane %v1547, %v1552
    %v1555 = vunpack.c.l.s4 1983009808
    %v1556 = vunpack.c.0.s8 %v1555
    %v1557 = vperm.slane %v1549, %v1556
    %v1558 = vrot.slane %v1529, 4
    %v1559 = vsel %vm213, %v1558, %v1517
    %v1560 = vrot.slane %v1517, 4
    %v1561 = vsel %vm213, %v1529, %v1560
    %v1563 = vunpack.c.l.s4 1934713408
    %v1564 = vunpack.c.0.s8 %v1563
    %v1565 = vperm.slane %v1559, %v1564
    %v1567 = vunpack.c.l.s4 1934713408
    %v1568 = vunpack.c.0.s8 %v1567
    %v1569 = vperm.slane %v1561, %v1568
    %v1570 = vrot.slane %v1533, 4
    %v1571 = vsel %vm213, %v1570, %v1521
    %v1572 = vrot.slane %v1521, 4
    %v1573 = vsel %vm213, %v1533, %v1572
    %v1575 = vunpack.c.l.s4 1934713408
    %v1576 = vunpack.c.0.s8 %v1575
    %v1577 = vperm.slane %v1571, %v1576
    %v1579 = vunpack.c.l.s4 1934713408
    %v1580 = vunpack.c.0.s8 %v1579
    %v1581 = vperm.slane %v1573, %v1580
    %v1582 = vrot.slane %v1553, 4
    %v1583 = vsel %vm213, %v1582, %v1541
    %v1584 = vrot.slane %v1541, 4
    %v1585 = vsel %vm213, %v1553, %v1584
    %v1587 = vunpack.c.l.s4 1934713408
    %v1588 = vunpack.c.0.s8 %v1587
    %v1589 = vperm.slane %v1583, %v1588
    %v1591 = vunpack.c.l.s4 1934713408
    %v1592 = vunpack.c.0.s8 %v1591
    %v1593 = vperm.slane %v1585, %v1592
    %v1594 = vrot.slane %v1557, 4
    %v1595 = vsel %vm213, %v1594, %v1545
    %v1596 = vrot.slane %v1545, 4
    %v1597 = vsel %vm213, %v1557, %v1596
    %v1599 = vunpack.c.l.s4 1934713408
    %v1600 = vunpack.c.0.s8 %v1599
    %v1601 = vperm.slane %v1595, %v1600
    %v1603 = vunpack.c.l.s4 1934713408
    %v1604 = vunpack.c.0.s8 %v1603
    %v1605 = vperm.slane %v1597, %v1604
    %v1606 = vrot.slane %v1589, 4
    %v1607 = vsel %vm213, %v1606, %v1565
    %v1608 = vrot.slane %v1565, 4
    %v1609 = vsel %vm213, %v1589, %v1608
    %v1610 = vrot.slane %v1593, 4
    %v1611 = vsel %vm213, %v1610, %v1569
    %v1612 = vrot.slane %v1569, 4
    %v1613 = vsel %vm213, %v1593, %v1612
    %v1614 = vrot.slane %v1601, 4
    %v1615 = vsel %vm213, %v1614, %v1577
    %v1616 = vrot.slane %v1577, 4
    %v1617 = vsel %vm213, %v1601, %v1616
    %v1618 = vrot.slane %v1605, 4
    %v1619 = vsel %vm213, %v1618, %v1581
    %v1620 = vrot.slane %v1581, 4
    %v1621 = vsel %vm213, %v1605, %v1620
    %v1622 = vrot.slane %v1611, 4
    %v1623 = vsel %vm213, %v1622, %v1607
    %v1624 = vrot.slane %v1607, 4
    %v1625 = vsel %vm213, %v1611, %v1624
    %v1627 = vunpack.c.l.s4 1983009808
    %v1628 = vunpack.c.0.s8 %v1627
    %v1629 = vperm.slane %v1623, %v1628
    %v1631 = vunpack.c.l.s4 1983009808
    %v1632 = vunpack.c.0.s8 %v1631
    %v1633 = vperm.slane %v1625, %v1632
    %v1634 = vrot.slane %v1613, 4
    %v1635 = vsel %vm213, %v1634, %v1609
    %v1636 = vrot.slane %v1609, 4
    %v1637 = vsel %vm213, %v1613, %v1636
    %v1639 = vunpack.c.l.s4 1983009808
    %v1640 = vunpack.c.0.s8 %v1639
    %v1641 = vperm.slane %v1635, %v1640
    %v1643 = vunpack.c.l.s4 1983009808
    %v1644 = vunpack.c.0.s8 %v1643
    %v1645 = vperm.slane %v1637, %v1644
    %v1646 = vrot.slane %v1619, 4
    %v1647 = vsel %vm213, %v1646, %v1615
    %v1648 = vrot.slane %v1615, 4
    %v1649 = vsel %vm213, %v1619, %v1648
    %v1651 = vunpack.c.l.s4 1983009808
    %v1652 = vunpack.c.0.s8 %v1651
    %v1653 = vperm.slane %v1647, %v1652
    %v1655 = vunpack.c.l.s4 1983009808
    %v1656 = vunpack.c.0.s8 %v1655
    %v1657 = vperm.slane %v1649, %v1656
    %v1658 = vrot.slane %v1621, 4
    %v1659 = vsel %vm213, %v1658, %v1617
    %v1660 = vrot.slane %v1617, 4
    %v1661 = vsel %vm213, %v1621, %v1660
    %v1663 = vunpack.c.l.s4 1983009808
    %v1664 = vunpack.c.0.s8 %v1663
    %v1665 = vperm.slane %v1659, %v1664
    %v1667 = vunpack.c.l.s4 1983009808
    %v1668 = vunpack.c.0.s8 %v1667
    %v1669 = vperm.slane %v1661, %v1668
    %v1670 = vrot.slane %v1641, 4
    %v1671 = vsel %vm213, %v1670, %v1629
    %v1672 = vrot.slane %v1629, 4
    %v1673 = vsel %vm213, %v1641, %v1672
    %v1675 = vunpack.c.l.s4 1934713408
    %v1676 = vunpack.c.0.s8 %v1675
    %v1677 = vperm.slane %v1671, %v1676
    %v1679 = vunpack.c.l.s4 1934713408
    %v1680 = vunpack.c.0.s8 %v1679
    %v1681 = vperm.slane %v1673, %v1680
    %v1682 = vrot.slane %v1645, 4
    %v1683 = vsel %vm213, %v1682, %v1633
    %v1684 = vrot.slane %v1633, 4
    %v1685 = vsel %vm213, %v1645, %v1684
    %v1687 = vunpack.c.l.s4 1934713408
    %v1688 = vunpack.c.0.s8 %v1687
    %v1689 = vperm.slane %v1683, %v1688
    %v1691 = vunpack.c.l.s4 1934713408
    %v1692 = vunpack.c.0.s8 %v1691
    %v1693 = vperm.slane %v1685, %v1692
    %v1694 = vrot.slane %v1665, 4
    %v1695 = vsel %vm213, %v1694, %v1653
    %v1696 = vrot.slane %v1653, 4
    %v1697 = vsel %vm213, %v1665, %v1696
    %v1699 = vunpack.c.l.s4 1934713408
    %v1700 = vunpack.c.0.s8 %v1699
    %v1701 = vperm.slane %v1695, %v1700
    %v1703 = vunpack.c.l.s4 1934713408
    %v1704 = vunpack.c.0.s8 %v1703
    %v1705 = vperm.slane %v1697, %v1704
    %v1706 = vrot.slane %v1669, 4
    %v1707 = vsel %vm213, %v1706, %v1657
    %v1708 = vrot.slane %v1657, 4
    %v1709 = vsel %vm213, %v1669, %v1708
    %v1711 = vunpack.c.l.s4 1934713408
    %v1712 = vunpack.c.0.s8 %v1711
    %v1713 = vperm.slane %v1707, %v1712
    %v1715 = vunpack.c.l.s4 1934713408
    %v1716 = vunpack.c.0.s8 %v1715
    %v1717 = vperm.slane %v1709, %v1716
    %v1718 = vrot.slane %v1701, 4
    %v1719 = vsel %vm213, %v1718, %v1677
    %v1720 = vrot.slane %v1677, 4
    %v1721 = vsel %vm213, %v1701, %v1720
    %v1722 = vrot.slane %v1705, 4
    %v1723 = vsel %vm213, %v1722, %v1681
    %v1724 = vrot.slane %v1681, 4
    %v1725 = vsel %vm213, %v1705, %v1724
    %v1726 = vrot.slane %v1713, 4
    %v1727 = vsel %vm213, %v1726, %v1689
    %v1728 = vrot.slane %v1689, 4
    %v1729 = vsel %vm213, %v1713, %v1728
    %v1730 = vrot.slane %v1717, 4
    %v1731 = vsel %vm213, %v1730, %v1693
    %v1732 = vrot.slane %v1693, 4
    %v1733 = vsel %vm213, %v1717, %v1732
    %1735 = vrot.lane.b32.xlu0 %v1721, 32
    %v1736 = vpop.permute.xlu0 %1735
    %1739 = vrot.lane.b32.xlu0 %v1723, 64
    %v1740 = vpop.permute.xlu0 %1739
    %1743 = vrot.lane.b32.xlu0 %v1725, 96
    %v1744 = vpop.permute.xlu0 %1743
    %1747 = vrot.lane.b32.xlu0 %v1729, 32
    %v1748 = vpop.permute.xlu0 %1747
    %1751 = vrot.lane.b32.xlu0 %v1731, 64
    %v1752 = vpop.permute.xlu0 %1751
    %1755 = vrot.lane.b32.xlu0 %v1733, 96
    %v1756 = vpop.permute.xlu0 %1755
    %v1758 = vsel %vm65, %v1719, %v1736
    %vm1759 = vcmask 523264
    %v1760 = vsel %vm1759, %v1758, %v1740
    %vm1761 = vcmask 785408
    %v1762 = vsel %vm1761, %v1760, %v1744
    %v1763 = vsel %vm65, %v1727, %v1748
    %v1764 = vsel %vm1759, %v1763, %v1752
    %v1765 = vsel %vm1761, %v1764, %v1756
    %v1766 = vld [vmem:[%s5] sm:$0xf]
    %v1767 = vld [vmem:[%s5 + $0x4] sm:$0xf]
    %v1768 = vld [vmem:[%s5 + $0x8] sm:$0xf]
    %v1769 = vld [vmem:[%s5 + $0xc] sm:$0xf]
    %v1770 = vld [vmem:[%s5 + $0x10] sm:$0xf]
    %v1771 = vld [vmem:[%s5 + $0x14] sm:$0xf]
    %v1772 = vld [vmem:[%s5 + $0x18] sm:$0xf]
    %v1773 = vld [vmem:[%s5 + $0x1c] sm:$0xf]
    %v1774 = vld [vmem:[%s5 + $0x20] sm:$0xf]
    %v1775 = vld [vmem:[%s5 + $0x24] sm:$0xf]
    %v1776 = vld [vmem:[%s5 + $0x28] sm:$0xf]
    %v1777 = vld [vmem:[%s5 + $0x2c] sm:$0xf]
    %v1778 = vld [vmem:[%s5 + $0x30] sm:$0xf]
    %v1779 = vld [vmem:[%s5 + $0x34] sm:$0xf]
    %v1780 = vld [vmem:[%s5 + $0x38] sm:$0xf]
    %v1781 = vld [vmem:[%s5 + $0x3c] sm:$0xf]
    %v1782 = vld [vmem:[%s5 + $0x40] sm:$0xf]
    %v1783 = vld [vmem:[%s5 + $0x44] sm:$0xf]
    %v1784 = vld [vmem:[%s5 + $0x48] sm:$0xf]
    %v1785 = vld [vmem:[%s5 + $0x4c] sm:$0xf]
    %v1786 = vld [vmem:[%s5 + $0x50] sm:$0xf]
    %v1787 = vld [vmem:[%s5 + $0x54] sm:$0xf]
    %v1788 = vld [vmem:[%s5 + $0x58] sm:$0xf]
    %v1789 = vld [vmem:[%s5 + $0x5c] sm:$0xf]
    %v1790 = vld [vmem:[%s5 + $0x60] sm:$0xf]
    %v1791 = vld [vmem:[%s5 + $0x64] sm:$0xf]
    %v1792 = vld [vmem:[%s5 + $0x68] sm:$0xf]
    %v1793 = vld [vmem:[%s5 + $0x6c] sm:$0xf]
    %v1794 = vld [vmem:[%s5 + $0x70] sm:$0xf]
    %v1795 = vld [vmem:[%s5 + $0x74] sm:$0xf]
    %v1796 = vld [vmem:[%s5 + $0x78] sm:$0xf]
    %v1797 = vld [vmem:[%s5 + $0x7c] sm:$0xf]
    %v1798 = vunpack.c.l.bf16 %v1766
    %v1799 = vunpack.c.l.bf16 %v1767
    %v1800 = vunpack.c.l.bf16 %v1768
    %v1801 = vunpack.c.l.bf16 %v1769
    %v1802 = vunpack.c.l.bf16 %v1770
    %v1803 = vunpack.c.l.bf16 %v1771
    %v1804 = vunpack.c.l.bf16 %v1772
    %v1805 = vunpack.c.l.bf16 %v1773
    %v1806 = vunpack.c.l.bf16 %v1774
    %v1807 = vunpack.c.l.bf16 %v1775
    %v1808 = vunpack.c.l.bf16 %v1776
    %v1809 = vunpack.c.l.bf16 %v1777
    %v1810 = vunpack.c.l.bf16 %v1778
    %v1811 = vunpack.c.l.bf16 %v1779
    %v1812 = vunpack.c.l.bf16 %v1780
    %v1813 = vunpack.c.l.bf16 %v1781
    %v1814 = vunpack.c.l.bf16 %v1782
    %v1815 = vunpack.c.l.bf16 %v1783
    %v1816 = vunpack.c.l.bf16 %v1784
    %v1817 = vunpack.c.l.bf16 %v1785
    %v1818 = vunpack.c.l.bf16 %v1786
    %v1819 = vunpack.c.l.bf16 %v1787
    %v1820 = vunpack.c.l.bf16 %v1788
    %v1821 = vunpack.c.l.bf16 %v1789
    %v1822 = vunpack.c.l.bf16 %v1790
    %v1823 = vunpack.c.l.bf16 %v1791
    %v1824 = vunpack.c.l.bf16 %v1792
    %v1825 = vunpack.c.l.bf16 %v1793
    %v1826 = vunpack.c.l.bf16 %v1794
    %v1827 = vunpack.c.l.bf16 %v1795
    %v1828 = vunpack.c.l.bf16 %v1796
    %v1829 = vunpack.c.l.bf16 %v1797
    %v1830 = vld [vmem:[%s6] sm:$0x1]
    %v1832 = vperm.slane %v1830, 0
    %1834 = vmatpush.msra.mxu0 %v1813
    %1835 = vmatpush.msra.mxu0 %v1812
    %1836 = vmatpush.msra.mxu0 %v1811
    %1837 = vmatpush.msra.mxu0 %v1810
    %1838 = vmatpush.msra.mxu0 %v1809
    %1839 = vmatpush.msra.mxu0 %v1808
    %1840 = vmatpush.msra.mxu0 %v1807
    %1841 = vmatpush.msra.mxu0 %v1806
    %1842 = vmatpush.msra.mxu0 %v1805
    %1843 = vmatpush.msra.mxu0 %v1804
    %1844 = vmatpush.msra.mxu0 %v1803
    %1845 = vmatpush.msra.mxu0 %v1802
    %1846 = vmatpush.msra.mxu0 %v1801
    %1847 = vmatpush.msra.mxu0 %v1800
    %1848 = vmatpush.msra.mxu0 %v1799
    %1849 = vmatpush.msra.mxu0 %v1798
    %1850 = vmatmul.f32.gmra.mxu0 %v1762
    %v1851 = vpop.f32.mrf.mxu0
    %v1852 = vadd.f32 %v1832, %v1851
    %1853 = vdwg.mxu0
    %1854 = vmatpush.msra.mxu0 %v1829
    %1855 = vmatpush.msra.mxu0 %v1828
    %1856 = vmatpush.msra.mxu0 %v1827
    %1857 = vmatpush.msra.mxu0 %v1826
    %1858 = vmatpush.msra.mxu0 %v1825
    %1859 = vmatpush.msra.mxu0 %v1824
    %1860 = vmatpush.msra.mxu0 %v1823
    %1861 = vmatpush.msra.mxu0 %v1822
    %1862 = vmatpush.msra.mxu0 %v1821
    %1863 = vmatpush.msra.mxu0 %v1820
    %1864 = vmatpush.msra.mxu0 %v1819
    %1865 = vmatpush.msra.mxu0 %v1818
    %1866 = vmatpush.msra.mxu0 %v1817
    %1867 = vmatpush.msra.mxu0 %v1816
    %1868 = vmatpush.msra.mxu0 %v1815
    %1869 = vmatpush.msra.mxu0 %v1814
    %1870 = vmatmul.f32.gmra.mxu0 %v1765
    %v1871 = vpop.f32.mrf.mxu0
    %v1872 = vadd.f32 %v1852, %v1871
    %1873 = vdwg.mxu0
    %1874 = vst.msk [vmem:[#allocation2] sm:$0xff] %vm65, %v1872
    // Predicated region
    $region30: #{tpu_custom_call.1} parent=1 // pred_check
      _
    $region31: #{tpu_custom_call.1} parent=1 // pred_check_branch
      %1876 = sbr.rel (0) target = $region33
    $region32: #{tpu_custom_call.1} parent=1 // pred_region
      %1878 = vsyncadd [#allocation3], 0
      %s1880 = sshll.u32 [#allocation2], 4
      %s1881 = int_to_ptr.vmem [resolvable:$true] %s1880
      %s1882 = sshll.u32 %s7, 4
      %s1883 = int_to_ptr.hbm [resolvable:$true] %s1882
      %1885 = dma.vmem_to_hbm [thread:$0]  %s1881, 128, %s1883, [#allocation3]
    $region33: #{tpu_custom_call.1} parent=1 // pred_fallthru
      _
    // Predicated region
    $region34: #{tpu_custom_call.1} parent=1 // pred_check
      _
    $region35: #{tpu_custom_call.1} parent=1 // pred_check_branch
      %1887 = sbr.rel (0) target = $region37
    $region36: #{tpu_custom_call.1} parent=1 // pred_region
      %1889 = dma.done [#allocation3], 128
    $region37: #{tpu_custom_call.1} parent=1 // pred_fallthru
      _
    %1890 = vsyncpa [#allocation3], 1

</llo_original>
